<compile_context>
chip_gen: v5e
topology: v5e:2x2
jax: 0.10.0
libtpu: 0.0.40
codegen_flags: <defaults>
</compile_context>

<pallas_src>
import functools

import jax
import jax.numpy as jnp
import numpy as np
from jax.experimental import pallas as pl
from jax.experimental.pallas import tpu as pltpu

PAD = 0          # Constants.PAD
NEG_INF = -1e9   # finite additive mask value
LN_EPS = 1e-5
_MATMUL_WEIGHT_KEYS = ("wq", "wkv", "wo", "w1", "w2")


# --------------------------------------------------------------------------
# In-kernel helpers
# --------------------------------------------------------------------------
def _layernorm_mask(y, g, b, npm):
    mean = jnp.mean(y, axis=-1, keepdims=True)
    var = jnp.mean((y - mean) ** 2, axis=-1, keepdims=True)
    yn = (y - mean) * jax.lax.rsqrt(var + LN_EPS)
    return (yn * g + b) * npm


def _mha(xq, kv, mask_add, wq, bq, wkv, bkv, wo, *, n_head, d_k, d_v, scale):
    """All-heads attention for a (tq, D) query tile against a (Lk, D) KV source.

    Matmul inputs are cast to the weight dtype (bf16 fast path); accumulation
    and every elementwise / softmax op stays f32. Returns the concatenated
    output projection (tq, D) WITHOUT bias / residual / LayerNorm.
    """
    cdt = wq.dtype
    q = jnp.dot(xq.astype(cdt), wq, preferred_element_type=jnp.float32) + bq       # (tq, H*dk)
    kvp = jnp.dot(kv.astype(cdt), wkv, preferred_element_type=jnp.float32) + bkv   # (Lk, H*(dk+dv))

    heads = []
    # TODO(synk): for large n_head switch to lax.fori_loop writing head outputs
    # into a VMEM scratch to bound vreg live ranges (small n_head is fine unrolled).
    for h in range(n_head):
        qh = q[:, h * d_k:(h + 1) * d_k].astype(cdt)
        kh = kvp[:, h * d_k:(h + 1) * d_k].astype(cdt)
        vh = kvp[:, n_head * d_k + h * d_v:n_head * d_k + (h + 1) * d_v].astype(cdt)
        # q @ k^T without materializing a transpose.
        s = jax.lax.dot_general(qh, kh, (((1,), (1,)), ((), ())),
                                preferred_element_type=jnp.float32) * scale
        if mask_add is not None:
            s = s + mask_add
        s = s - jnp.max(s, axis=-1, keepdims=True)       # stable softmax
        p = jnp.exp(s)
        p = p * pl.reciprocal(jnp.sum(p, axis=-1, keepdims=True), approx=True)
        heads.append(jnp.dot(p.astype(cdt), vh, preferred_element_type=jnp.float32))

    # Single deep-K output projection: (tq, H*dv) @ (H*dv, D).
    o_cat = jnp.concatenate(heads, axis=-1) if n_head > 1 else heads[0]
    return jnp.dot(o_cat.astype(cdt), wo, preferred_element_type=jnp.float32)


def decoder_layer_kernel(
    x_ref, enc_ref, kpad_ref, npm_ref,
    s_wq, s_bq, s_wkv, s_bkv, s_wo, s_bo, s_g, s_b,
    e_wq, e_bq, e_wkv, e_bkv, e_wo, e_bo, e_g, e_b,
    f_w1, f_b1, f_w2, f_b2, f_g, f_b,
    o_ref,
    *, n_head, d_k, d_v, scale, tq):
    """One full decoder layer for one (batch, query-tile) grid point."""
    Lt = x_ref.shape[1]
    x_full = x_ref[0]                                           # (Lt, D) self-attn KV source
    q_start = pl.multiple_of(pl.program_id(1) * tq, tq)
    xq = x_ref[0, pl.ds(q_start, tq), :]                        # (tq, D) query / residual tile
    npm = npm_ref[0]                                            # (tq, 1)
    kpad = kpad_ref[0]                                          # (1, Lt) additive key-pad row

    # In-kernel additive self-attention mask (causal triangle + key padding).
    rows = jax.lax.broadcasted_iota(jnp.int32, (tq, Lt), 0) + q_start
    cols = jax.lax.broadcasted_iota(jnp.int32, (tq, Lt), 1)
    slf_mask = jnp.where(cols > rows, NEG_INF, 0.0).astype(jnp.float32) + kpad

    # --- sub-block 1: masked self-attention + out-proj + residual + LN + npm
    y = _mha(xq, x_full, slf_mask, s_wq[...], s_bq[...], s_wkv[...], s_bkv[...],
             s_wo[...], n_head=n_head, d_k=d_k, d_v=d_v, scale=scale)
    x1 = _layernorm_mask(y + s_bo[...] + xq, s_g[...], s_b[...], npm)

    # --- sub-block 2: enc-dec attention (mask is all-False in this module) + LN + npm
    y = _mha(x1, enc_ref[0], None, e_wq[...], e_bq[...], e_wkv[...], e_bkv[...],
             e_wo[...], n_head=n_head, d_k=d_k, d_v=d_v, scale=scale)
    x2 = _layernorm_mask(y + e_bo[...] + x1, e_g[...], e_b[...], npm)

    # --- sub-block 3: position-wise FFN + residual + LN + npm
    cdt = f_w1.dtype
    h = jnp.maximum(
        jnp.dot(x2.astype(cdt), f_w1[...], preferred_element_type=jnp.float32) + f_b1[...],
        0.0)
    y = jnp.dot(h.astype(cdt), f_w2[...], preferred_element_type=jnp.float32) + f_b2[...]
    o_ref[0] = _layernorm_mask(y + x2, f_g[...], f_b[...], npm)


# --------------------------------------------------------------------------
# Pallas wrapper
# --------------------------------------------------------------------------
def _const_spec(arr):
    # Full-array block, constant index_map -> grid-invariant / VMEM-resident.
    return pl.BlockSpec(arr.shape, lambda *_: (0,) * arr.ndim)


def _pick_query_tile(L):
    for cand in (128, 64, 32, 16, 8):
        if L % cand == 0:
            return cand
    # TODO(synk): pad ragged Lt to a multiple of 8 instead of one full-length tile.
    return L


def fused_decoder_layer(x, enc_out, kpad_add, non_pad_mask, params, *, n_head, d_k, d_v):
    """One pallas_call per decoder layer, gridded over (batch, query tiles)."""
    B, Lt, D = x.shape
    Ls = enc_out.shape[1]
    scale = 1.0 / float(np.sqrt(d_k))
    tq = _pick_query_tile(Lt)
    n_qt = Lt // tq

    slf, enc, ffn = params["slf"], params["enc"], params["ffn"]
    v2 = lambda a: a.reshape(1, -1)
    weights = [
        slf["wq"], v2(slf["bq"]), slf["wkv"], v2(slf["bkv"]),
        slf["wo"], v2(slf["bo"]), v2(slf["ln_g"]), v2(slf["ln_b"]),
        enc["wq"], v2(enc["bq"]), enc["wkv"], v2(enc["bkv"]),
        enc["wo"], v2(enc["bo"]), v2(enc["ln_g"]), v2(enc["ln_b"]),
        ffn["w1"], v2(ffn["b1"]), ffn["w2"], v2(ffn["b2"]),
        v2(ffn["ln_g"]), v2(ffn["ln_b"]),
    ]

    in_specs = [
        pl.BlockSpec((1, Lt, D), lambda b, q: (b, 0, 0)),   # x (self-attn KV + query rows sliced in-kernel)
        pl.BlockSpec((1, Ls, D), lambda b, q: (b, 0, 0)),   # encoder output (enc-attn KV)
        pl.BlockSpec((1, 1, Lt), lambda b, q: (b, 0, 0)),   # additive key-pad mask row
        pl.BlockSpec((1, tq, 1), lambda b, q: (b, q, 0)),   # non-pad mask (query tile)
    ] + [_const_spec(w) for w in weights]

    # Explicit VMEM budget: double-buffered activation + weight blocks, in-kernel
    # intermediates, plus slack, clamped to v7x's 64 MiB physical VMEM.
    d_inner = int(ffn["w1"].shape[1])
    act_bytes = 4 * (Lt * D + Ls * D + Lt + tq + tq * D)
    w_bytes = sum(int(w.size) * w.dtype.itemsize for w in weights)
    scratch_bytes = 4 * (tq * d_inner + n_head * tq * max(Lt, Ls) + 6 * tq * D)
    vmem_limit = int(min(max(2 * (act_bytes + w_bytes) + scratch_bytes + (4 << 20),
                             16 << 20),
                         64 << 20))

    kernel = functools.partial(decoder_layer_kernel,
                               n_head=n_head, d_k=d_k, d_v=d_v, scale=scale, tq=tq)

    return pl.pallas_call(
        kernel,
        out_shape=jax.ShapeDtypeStruct((B, Lt, D), jnp.float32),
        grid=(B, n_qt),
        in_specs=in_specs,
        out_specs=pl.BlockSpec((1, tq, D), lambda b, q: (b, q, 0)),
        compiler_params=pltpu.CompilerParams(
            dimension_semantics=("parallel", "parallel"),
            vmem_limit_bytes=vmem_limit),
    )(x, enc_out, kpad_add, non_pad_mask, *weights)


# --------------------------------------------------------------------------
# Decoder forward
# --------------------------------------------------------------------------
def decoder_forward(tgt_seq, tgt_pos, src_seq, enc_output,
                    word_emb, pos_table, layer_params, n_head, d_k, d_v):
    del src_seq  # module builds dec_enc_attn_mask from src_tmp=ones -> all-False -> no mask
    # tiny per-sequence mask vectors; the O(B*L^2) mask is generated in-kernel
    non_pad_mask = (tgt_seq != PAD).astype(jnp.float32)[..., None]                        # (B,Lt,1)
    kpad_add = jnp.where(tgt_seq == PAD, NEG_INF, 0.0).astype(jnp.float32)[:, None, :]    # (B,1,Lt)

    # embedding lookups (gathers; plain-JAX glue)
    x = (word_emb[tgt_seq] + pos_table[tgt_pos]).astype(jnp.float32)                      # (B,Lt,D)

    for p in layer_params:
        x = fused_decoder_layer(x, enc_output, kpad_add, non_pad_mask, p,
                                n_head=n_head, d_k=d_k, d_v=d_v)
    return x


# --------------------------------------------------------------------------
# Pure-JAX reference (f32, for correctness check)
# --------------------------------------------------------------------------
def reference_forward(tgt_seq, tgt_pos, enc_output, word_emb, pos_table,
                      layer_params, n_head, d_k, d_v):
    B, Lt = tgt_seq.shape
    non_pad = (tgt_seq != PAD).astype(jnp.float32)[..., None]
    subseq = jnp.triu(jnp.ones((Lt, Lt), jnp.float32), k=1)[None]
    keypad = (tgt_seq == PAD).astype(jnp.float32)[:, None, :]
    slf_add = jnp.where((keypad + subseq) > 0, NEG_INF, 0.0).astype(jnp.float32)

    def ln(y, g, b):
        m = y.mean(-1, keepdims=True)
        v = ((y - m) ** 2).mean(-1, keepdims=True)
        return (y - m) / jnp.sqrt(v + LN_EPS) * g + b

    def mha(x, kv, mask_add, p):
        Bq, Lq, _ = x.shape
        Lk = kv.shape[1]
        q = x @ p["wq"] + p["bq"]
        kvp = kv @ p["wkv"] + p["bkv"]
        qh = q.reshape(Bq, Lq, n_head, d_k).transpose(0, 2, 1, 3)
        kh = kvp[..., :n_head * d_k].reshape(Bq, Lk, n_head, d_k).transpose(0, 2, 1, 3)
        vh = kvp[..., n_head * d_k:].reshape(Bq, Lk, n_head, d_v).transpose(0, 2, 1, 3)
        s = jnp.einsum("bhqd,bhkd->bhqk", qh, kh) / np.sqrt(d_k)
        if mask_add is not None:
            s = s + mask_add[:, None]
        a = jax.nn.softmax(s, axis=-1)
        o = jnp.einsum("bhqk,bhkd->bhqd", a, vh)
        o = o.transpose(0, 2, 1, 3).reshape(Bq, Lq, n_head * d_v)
        y = o @ p["wo"] + p["bo"] + x
        return ln(y, p["ln_g"], p["ln_b"]) * non_pad

    def ffn(x, p):
        h = jax.nn.relu(x @ p["w1"] + p["b1"])
        y = h @ p["w2"] + p["b2"] + x
        return ln(y, p["ln_g"], p["ln_b"]) * non_pad

    x = word_emb[tgt_seq] + pos_table[tgt_pos]
    for p in layer_params:
        x = mha(x, x, slf_add, p["slf"])
        x = mha(x, enc_output, None, p["enc"])
        x = ffn(x, p["ffn"])
    return x


# --------------------------------------------------------------------------
# Parameter init / dtype casting
# --------------------------------------------------------------------------
def sinusoid_encoding_table(n_position, d_hid, padding_idx=None):
    pos = np.arange(n_position, dtype=np.float64)[:, None]
    j = np.arange(d_hid, dtype=np.float64)[None, :]
    angle = pos / np.power(10000.0, 2.0 * (np.floor(j / 2.0)) / d_hid)
    table = np.zeros((n_position, d_hid), dtype=np.float64)
    table[:, 0::2] = np.sin(angle[:, 0::2])
    table[:, 1::2] = np.cos(angle[:, 1::2])
    if padding_idx is not None:
        table[padding_idx] = 0.0
    return jnp.asarray(table, dtype=jnp.float32)


def init_params(key, n_layers, d_model, d_inner, n_head, d_k, d_v):
    kit = iter(jax.random.split(key, n_layers * 32))

    def nrm(shape, scale):
        return jax.random.normal(next(kit), shape, jnp.float32) * scale

    def attn_params():
        wq = nrm((d_model, n_head * d_k), 1.0 / np.sqrt(d_model))
        wk = nrm((d_model, n_head * d_k), 1.0 / np.sqrt(d_model))
        wv = nrm((d_model, n_head * d_v), 1.0 / np.sqrt(d_model))
        return {
            "wq": wq,
            "bq": nrm((n_head * d_k,), 0.02),
            # K and V projections packed: one (D, H*(dk+dv)) matmul in-kernel
            "wkv": jnp.concatenate([wk, wv], axis=1),
            "bkv": nrm((n_head * (d_k + d_v),), 0.02),
            "wo": nrm((n_head * d_v, d_model), 1.0 / np.sqrt(n_head * d_v)),
            "bo": nrm((d_model,), 0.02),
            "ln_g": 1.0 + nrm((d_model,), 0.02),
            "ln_b": nrm((d_model,), 0.02),
        }

    layers = []
    for _ in range(n_layers):
        layers.append({
            "slf": attn_params(),
            "enc": attn_params(),
            "ffn": {
                "w1": nrm((d_model, d_inner), 1.0 / np.sqrt(d_model)),
                "b1": nrm((d_inner,), 0.02),
                "w2": nrm((d_inner, d_model), 1.0 / np.sqrt(d_inner)),
                "b2": nrm((d_model,), 0.02),
                "ln_g": 1.0 + nrm((d_model,), 0.02),
                "ln_b": nrm((d_model,), 0.02),
            },
        })
    return layers


def cast_matmul_weights(layer_params, dtype):
    """Cast only the matmul weights to `dtype`; biases/LN params stay f32."""
    out = []
    for layer in layer_params:
        out.append({blk: {k: (v.astype(dtype) if k in _MATMUL_WEIGHT_KEYS else v)
                          for k, v in p.items()}
                    for blk, p in layer.items()})
    return out


# --------------------------------------------------------------------------
if __name__ == "__main__":
    # small, decoder-consistent shapes (real deployments should use
    # d_model / head dims that are multiples of 128 for lane-dense layouts)
    n_tgt_vocab = 16
    len_max_seq = 16
    d_word_vec = d_model = 32
    n_layers = 2
    n_head = 2
    d_k = d_v = 16
    d_inner = 64
    B, Lt, Ls = 2, 8, 10

    key = jax.random.PRNGKey(0)
    k_emb, k_seq, k_src, k_enc, k_par = jax.random.split(key, 5)

    # embeddings (word-emb PAD row zeroed, like nn.Embedding(padding_idx=PAD))
    word_emb = jax.random.normal(k_emb, (n_tgt_vocab, d_word_vec), jnp.float32) * 0.1
    word_emb = word_emb.at[PAD].set(0.0)
    pos_table = sinusoid_encoding_table(len_max_seq + 1, d_word_vec, padding_idx=0)

    # inputs (no PAD tokens so the demo exactly matches masked_fill(-inf) semantics)
    tgt_seq = jax.random.randint(k_seq, (B, Lt), 1, n_tgt_vocab, dtype=jnp.int32)
    tgt_pos = jnp.tile(jnp.arange(1, Lt + 1, dtype=jnp.int32)[None, :], (B, 1))
    src_seq = jax.random.randint(k_src, (B, Ls), 1, n_tgt_vocab, dtype=jnp.int32)
    enc_output = jax.random.normal(k_enc, (B, Ls, d_model), jnp.float32)

    params_f32 = init_params(k_par, n_layers, d_model, d_inner, n_head, d_k, d_v)
    ref = reference_forward(tgt_seq, tgt_pos, enc_output, word_emb, pos_table,
                            params_f32, n_head, d_k, d_v)

    # 1) f32 run: strict structural check against the pure-JAX reference.
    out_f32 = decoder_forward(tgt_seq, tgt_pos, src_seq, enc_output,
                              word_emb, pos_table, params_f32, n_head, d_k, d_v)
    out_f32 = jax.block_until_ready(out_f32)
    assert out_f32.shape == (B, Lt, d_model)
    assert bool(jnp.all(jnp.isfinite(out_f32)))
    err32 = float(jnp.max(jnp.abs(out_f32 - ref)))
    assert err32 < 2e-2, f"f32 kernel vs reference max abs diff = {err32}"

    # 2) bf16 matmul-weight run: the optimized inference path (f32 accumulation).
    params_bf16 = cast_matmul_weights(params_f32, jnp.bfloat16)
    out_bf16 = decoder_forward(tgt_seq, tgt_pos, src_seq, enc_output,
                               word_emb, pos_table, params_bf16, n_head, d_k, d_v)
    out_bf16 = jax.block_until_ready(out_bf16)
    assert out_bf16.shape == (B, Lt, d_model)
    assert bool(jnp.all(jnp.isfinite(out_bf16)))
    err16 = float(jnp.max(jnp.abs(out_bf16 - ref)))
    assert err16 < 2e-1, f"bf16 kernel vs reference max abs diff = {err16}"

    print("KERNEL_OK")
</pallas_src>

<mosaic_0001>
module attributes {stable_mosaic.version = 11 : i64} {
  func.func @decoder_layer_kernel(%arg0: i32, %arg1: i32, %arg2: memref<1x8x32xf32, #tpu.memory_space<vmem>>, %arg3: memref<1x10x32xf32, #tpu.memory_space<vmem>>, %arg4: memref<1x1x8xf32, #tpu.memory_space<vmem>>, %arg5: memref<1x8x1xf32, #tpu.memory_space<vmem>>, %arg6: memref<32x32xf32, #tpu.memory_space<vmem>>, %arg7: memref<1x32xf32, #tpu.memory_space<vmem>>, %arg8: memref<32x64xf32, #tpu.memory_space<vmem>>, %arg9: memref<1x64xf32, #tpu.memory_space<vmem>>, %arg10: memref<32x32xf32, #tpu.memory_space<vmem>>, %arg11: memref<1x32xf32, #tpu.memory_space<vmem>>, %arg12: memref<1x32xf32, #tpu.memory_space<vmem>>, %arg13: memref<1x32xf32, #tpu.memory_space<vmem>>, %arg14: memref<32x32xf32, #tpu.memory_space<vmem>>, %arg15: memref<1x32xf32, #tpu.memory_space<vmem>>, %arg16: memref<32x64xf32, #tpu.memory_space<vmem>>, %arg17: memref<1x64xf32, #tpu.memory_space<vmem>>, %arg18: memref<32x32xf32, #tpu.memory_space<vmem>>, %arg19: memref<1x32xf32, #tpu.memory_space<vmem>>, %arg20: memref<1x32xf32, #tpu.memory_space<vmem>>, %arg21: memref<1x32xf32, #tpu.memory_space<vmem>>, %arg22: memref<32x64xf32, #tpu.memory_space<vmem>>, %arg23: memref<1x64xf32, #tpu.memory_space<vmem>>, %arg24: memref<64x32xf32, #tpu.memory_space<vmem>>, %arg25: memref<1x32xf32, #tpu.memory_space<vmem>>, %arg26: memref<1x32xf32, #tpu.memory_space<vmem>>, %arg27: memref<1x32xf32, #tpu.memory_space<vmem>>, %arg28: memref<1x8x32xf32, #tpu.memory_space<vmem>>) attributes {dimension_semantics = [#tpu.dimension_semantics<parallel>, #tpu.dimension_semantics<parallel>], iteration_bounds = array<i64: 2, 1>, scalar_prefetch = 0 : i64, scratch_operands = 0 : i64, tpu.core_type = #tpu.core_type<tc>, window_params = [{transform_indices = @transform_0, window_bounds = array<i64: 1, 8, 32>}, {transform_indices = @transform_1, window_bounds = array<i64: 1, 10, 32>}, {transform_indices = @transform_2, window_bounds = array<i64: 1, 1, 8>}, {transform_indices = @transform_3, window_bounds = array<i64: 1, 8, 1>}, {pipeline_mode = #tpu.pipeline_mode<synchronous>, transform_indices = @transform_4, window_bounds = array<i64: 32, 32>}, {pipeline_mode = #tpu.pipeline_mode<synchronous>, transform_indices = @transform_5, window_bounds = array<i64: 1, 32>}, {pipeline_mode = #tpu.pipeline_mode<synchronous>, transform_indices = @transform_6, window_bounds = array<i64: 32, 64>}, {pipeline_mode = #tpu.pipeline_mode<synchronous>, transform_indices = @transform_7, window_bounds = array<i64: 1, 64>}, {pipeline_mode = #tpu.pipeline_mode<synchronous>, transform_indices = @transform_8, window_bounds = array<i64: 32, 32>}, {pipeline_mode = #tpu.pipeline_mode<synchronous>, transform_indices = @transform_9, window_bounds = array<i64: 1, 32>}, {pipeline_mode = #tpu.pipeline_mode<synchronous>, transform_indices = @transform_10, window_bounds = array<i64: 1, 32>}, {pipeline_mode = #tpu.pipeline_mode<synchronous>, transform_indices = @transform_11, window_bounds = array<i64: 1, 32>}, {pipeline_mode = #tpu.pipeline_mode<synchronous>, transform_indices = @transform_12, window_bounds = array<i64: 32, 32>}, {pipeline_mode = #tpu.pipeline_mode<synchronous>, transform_indices = @transform_13, window_bounds = array<i64: 1, 32>}, {pipeline_mode = #tpu.pipeline_mode<synchronous>, transform_indices = @transform_14, window_bounds = array<i64: 32, 64>}, {pipeline_mode = #tpu.pipeline_mode<synchronous>, transform_indices = @transform_15, window_bounds = array<i64: 1, 64>}, {pipeline_mode = #tpu.pipeline_mode<synchronous>, transform_indices = @transform_16, window_bounds = array<i64: 32, 32>}, {pipeline_mode = #tpu.pipeline_mode<synchronous>, transform_indices = @transform_17, window_bounds = array<i64: 1, 32>}, {pipeline_mode = #tpu.pipeline_mode<synchronous>, transform_indices = @transform_18, window_bounds = array<i64: 1, 32>}, {pipeline_mode = #tpu.pipeline_mode<synchronous>, transform_indices = @transform_19, window_bounds = array<i64: 1, 32>}, {pipeline_mode = #tpu.pipeline_mode<synchronous>, transform_indices = @transform_20, window_bounds = array<i64: 32, 64>}, {pipeline_mode = #tpu.pipeline_mode<synchronous>, transform_indices = @transform_21, window_bounds = array<i64: 1, 64>}, {pipeline_mode = #tpu.pipeline_mode<synchronous>, transform_indices = @transform_22, window_bounds = array<i64: 64, 32>}, {pipeline_mode = #tpu.pipeline_mode<synchronous>, transform_indices = @transform_23, window_bounds = array<i64: 1, 32>}, {pipeline_mode = #tpu.pipeline_mode<synchronous>, transform_indices = @transform_24, window_bounds = array<i64: 1, 32>}, {pipeline_mode = #tpu.pipeline_mode<synchronous>, transform_indices = @transform_25, window_bounds = array<i64: 1, 32>}, {transform_indices = @transform_26, window_bounds = array<i64: 1, 8, 32>}]} {
    %c0 = arith.constant 0 : index
    %c0_0 = arith.constant 0 : index
    %c0_1 = arith.constant 0 : index
    %0 = vector.load %arg2[%c0, %c0_0, %c0_1] : memref<1x8x32xf32, #tpu.memory_space<vmem>>, vector<1x8x32xf32>
    %1 = vector.shape_cast %0 : vector<1x8x32xf32> to vector<8x32xf32>
    %c8_i32 = arith.constant 8 : i32
    %2 = arith.muli %arg1, %c8_i32 : i32
    %3 = tpu.assume_multiple %2, 8 : i32
    %c0_2 = arith.constant 0 : index
    %4 = arith.index_cast %3 : i32 to index
    %c0_3 = arith.constant 0 : index
    %5 = vector.load %arg2[%c0_2, %4, %c0_3] : memref<1x8x32xf32, #tpu.memory_space<vmem>>, vector<1x8x32xf32>
    %6 = vector.shape_cast %5 : vector<1x8x32xf32> to vector<8x32xf32>
    %c0_4 = arith.constant 0 : index
    %c0_5 = arith.constant 0 : index
    %c0_6 = arith.constant 0 : index
    %7 = vector.load %arg5[%c0_4, %c0_5, %c0_6] : memref<1x8x1xf32, #tpu.memory_space<vmem>>, vector<1x8x1xf32>
    %8 = vector.shape_cast %7 : vector<1x8x1xf32> to vector<8x1xf32>
    %c0_7 = arith.constant 0 : index
    %c0_8 = arith.constant 0 : index
    %c0_9 = arith.constant 0 : index
    %9 = vector.load %arg4[%c0_7, %c0_8, %c0_9] : memref<1x1x8xf32, #tpu.memory_space<vmem>>, vector<1x1x8xf32>
    %10 = vector.shape_cast %9 : vector<1x1x8xf32> to vector<1x8xf32>
    %11 = tpu.iota {dimensions = array<i32: 0>} : vector<8x8xi32>
    %12 = vector.broadcast %3 : i32 to vector<8x8xi32>
    %13 = arith.addi %11, %12 : vector<8x8xi32>
    %14 = tpu.iota {dimensions = array<i32: 1>} : vector<8x8xi32>
    %15 = arith.cmpi sgt, %14, %13 : vector<8x8xi32>
    %cst = arith.constant -1.000000e+09 : f32
    %cst_10 = arith.constant 0.000000e+00 : f32
    %16 = vector.broadcast %cst : f32 to vector<8x8xf32>
    %17 = vector.broadcast %cst_10 : f32 to vector<8x8xf32>
    %18 = arith.select %15, %16, %17 : vector<8x8xi1>, vector<8x8xf32>
    %19 = vector.broadcast %10 : vector<1x8xf32> to vector<8x8xf32>
    %20 = arith.addf %18, %19 : vector<8x8xf32>
    %c0_11 = arith.constant 0 : index
    %c0_12 = arith.constant 0 : index
    %21 = vector.load %arg6[%c0_11, %c0_12] : memref<32x32xf32, #tpu.memory_space<vmem>>, vector<32x32xf32>
    %c0_13 = arith.constant 0 : index
    %c0_14 = arith.constant 0 : index
    %22 = vector.load %arg7[%c0_13, %c0_14] : memref<1x32xf32, #tpu.memory_space<vmem>>, vector<1x32xf32>
    %c0_15 = arith.constant 0 : index
    %c0_16 = arith.constant 0 : index
    %23 = vector.load %arg8[%c0_15, %c0_16] : memref<32x64xf32, #tpu.memory_space<vmem>>, vector<32x64xf32>
    %c0_17 = arith.constant 0 : index
    %c0_18 = arith.constant 0 : index
    %24 = vector.load %arg9[%c0_17, %c0_18] : memref<1x64xf32, #tpu.memory_space<vmem>>, vector<1x64xf32>
    %c0_19 = arith.constant 0 : index
    %c0_20 = arith.constant 0 : index
    %25 = vector.load %arg10[%c0_19, %c0_20] : memref<32x32xf32, #tpu.memory_space<vmem>>, vector<32x32xf32>
    %cst_21 = arith.constant dense<0.000000e+00> : vector<8x32xf32>
    %26 = tpu.matmul %6, %21, %cst_21 {dimension_numbers = #tpu.dot_dimension_numbers<[1], [0], [0], [1], [0, 0, 1, 1], [], []>} : vector<8x32xf32>, vector<32x32xf32>, vector<8x32xf32> -> vector<8x32xf32>
    %27 = vector.broadcast %22 : vector<1x32xf32> to vector<8x32xf32>
    %28 = arith.addf %26, %27 : vector<8x32xf32>
    %cst_22 = arith.constant dense<0.000000e+00> : vector<8x64xf32>
    %29 = tpu.matmul %1, %23, %cst_22 {dimension_numbers = #tpu.dot_dimension_numbers<[1], [0], [0], [1], [0, 0, 1, 1], [], []>} : vector<8x32xf32>, vector<32x64xf32>, vector<8x64xf32> -> vector<8x64xf32>
    %30 = vector.broadcast %24 : vector<1x64xf32> to vector<8x64xf32>
    %31 = arith.addf %29, %30 : vector<8x64xf32>
    %32 = vector.extract_strided_slice %28 {offsets = [0, 0], sizes = [8, 16], strides = [1, 1]} : vector<8x32xf32> to vector<8x16xf32>
    %33 = vector.extract_strided_slice %31 {offsets = [0, 0], sizes = [8, 16], strides = [1, 1]} : vector<8x64xf32> to vector<8x16xf32>
    %34 = vector.extract_strided_slice %31 {offsets = [0, 32], sizes = [8, 16], strides = [1, 1]} : vector<8x64xf32> to vector<8x16xf32>
    %cst_23 = arith.constant dense<0.000000e+00> : vector<8x8xf32>
    %35 = tpu.matmul %32, %33, %cst_23 {dimension_numbers = #tpu.dot_dimension_numbers<[1], [1], [0], [0], [0, 0, 1, 0], [], []>} : vector<8x16xf32>, vector<8x16xf32>, vector<8x8xf32> -> vector<8x8xf32>
    %cst_24 = arith.constant 2.500000e-01 : f32
    %36 = vector.broadcast %cst_24 : f32 to vector<8x8xf32>
    %37 = arith.mulf %35, %36 : vector<8x8xf32>
    %38 = arith.addf %37, %20 : vector<8x8xf32>
    %cst_25 = arith.constant dense<0xFF800000> : vector<8xf32>
    %39 = vector.multi_reduction <maximumf>, %38, %cst_25 [1] : vector<8x8xf32> to vector<8xf32>
    %40 = vector.shape_cast %39 : vector<8xf32> to vector<8x1xf32>
    %41 = vector.broadcast %40 : vector<8x1xf32> to vector<8x8xf32>
    %42 = arith.subf %38, %41 : vector<8x8xf32>
    %43 = math.exp %42 : vector<8x8xf32>
    %cst_26 = arith.constant dense<0.000000e+00> : vector<8xf32>
    %44 = vector.multi_reduction <add>, %43, %cst_26 [1] : vector<8x8xf32> to vector<8xf32>
    %45 = vector.shape_cast %44 : vector<8xf32> to vector<8x1xf32>
    %46 = tpu.reciprocal %45 {approx = true} : vector<8x1xf32> -> vector<8x1xf32>
    %47 = vector.broadcast %46 : vector<8x1xf32> to vector<8x8xf32>
    %48 = arith.mulf %43, %47 : vector<8x8xf32>
    %cst_27 = arith.constant dense<0.000000e+00> : vector<8x16xf32>
    %49 = tpu.matmul %48, %34, %cst_27 {dimension_numbers = #tpu.dot_dimension_numbers<[1], [0], [0], [1], [0, 0, 1, 1], [], []>} : vector<8x8xf32>, vector<8x16xf32>, vector<8x16xf32> -> vector<8x16xf32>
    %50 = vector.extract_strided_slice %28 {offsets = [0, 16], sizes = [8, 16], strides = [1, 1]} : vector<8x32xf32> to vector<8x16xf32>
    %51 = vector.extract_strided_slice %31 {offsets = [0, 16], sizes = [8, 16], strides = [1, 1]} : vector<8x64xf32> to vector<8x16xf32>
    %52 = vector.extract_strided_slice %31 {offsets = [0, 48], sizes = [8, 16], strides = [1, 1]} : vector<8x64xf32> to vector<8x16xf32>
    %cst_28 = arith.constant dense<0.000000e+00> : vector<8x8xf32>
    %53 = tpu.matmul %50, %51, %cst_28 {dimension_numbers = #tpu.dot_dimension_numbers<[1], [1], [0], [0], [0, 0, 1, 0], [], []>} : vector<8x16xf32>, vector<8x16xf32>, vector<8x8xf32> -> vector<8x8xf32>
    %cst_29 = arith.constant 2.500000e-01 : f32
    %54 = vector.broadcast %cst_29 : f32 to vector<8x8xf32>
    %55 = arith.mulf %53, %54 : vector<8x8xf32>
    %56 = arith.addf %55, %20 : vector<8x8xf32>
    %cst_30 = arith.constant dense<0xFF800000> : vector<8xf32>
    %57 = vector.multi_reduction <maximumf>, %56, %cst_30 [1] : vector<8x8xf32> to vector<8xf32>
    %58 = vector.shape_cast %57 : vector<8xf32> to vector<8x1xf32>
    %59 = vector.broadcast %58 : vector<8x1xf32> to vector<8x8xf32>
    %60 = arith.subf %56, %59 : vector<8x8xf32>
    %61 = math.exp %60 : vector<8x8xf32>
    %cst_31 = arith.constant dense<0.000000e+00> : vector<8xf32>
    %62 = vector.multi_reduction <add>, %61, %cst_31 [1] : vector<8x8xf32> to vector<8xf32>
    %63 = vector.shape_cast %62 : vector<8xf32> to vector<8x1xf32>
    %64 = tpu.reciprocal %63 {approx = true} : vector<8x1xf32> -> vector<8x1xf32>
    %65 = vector.broadcast %64 : vector<8x1xf32> to vector<8x8xf32>
    %66 = arith.mulf %61, %65 : vector<8x8xf32>
    %cst_32 = arith.constant dense<0.000000e+00> : vector<8x16xf32>
    %67 = tpu.matmul %66, %52, %cst_32 {dimension_numbers = #tpu.dot_dimension_numbers<[1], [0], [0], [1], [0, 0, 1, 1], [], []>} : vector<8x8xf32>, vector<8x16xf32>, vector<8x16xf32> -> vector<8x16xf32>
    %68 = tpu.concatenate %49, %67 in 1 : vector<8x16xf32>, vector<8x16xf32> -> vector<8x32xf32>
    %cst_33 = arith.constant dense<0.000000e+00> : vector<8x32xf32>
    %69 = tpu.matmul %68, %25, %cst_33 {dimension_numbers = #tpu.dot_dimension_numbers<[1], [0], [0], [1], [0, 0, 1, 1], [], []>} : vector<8x32xf32>, vector<32x32xf32>, vector<8x32xf32> -> vector<8x32xf32>
    %c0_34 = arith.constant 0 : index
    %c0_35 = arith.constant 0 : index
    %70 = vector.load %arg11[%c0_34, %c0_35] : memref<1x32xf32, #tpu.memory_space<vmem>>, vector<1x32xf32>
    %71 = vector.broadcast %70 : vector<1x32xf32> to vector<8x32xf32>
    %72 = arith.addf %69, %71 : vector<8x32xf32>
    %73 = arith.addf %72, %6 : vector<8x32xf32>
    %c0_36 = arith.constant 0 : index
    %c0_37 = arith.constant 0 : index
    %74 = vector.load %arg12[%c0_36, %c0_37] : memref<1x32xf32, #tpu.memory_space<vmem>>, vector<1x32xf32>
    %c0_38 = arith.constant 0 : index
    %c0_39 = arith.constant 0 : index
    %75 = vector.load %arg13[%c0_38, %c0_39] : memref<1x32xf32, #tpu.memory_space<vmem>>, vector<1x32xf32>
    %cst_40 = arith.constant dense<0.000000e+00> : vector<8xf32>
    %76 = vector.multi_reduction <add>, %73, %cst_40 [1] : vector<8x32xf32> to vector<8xf32>
    %77 = vector.shape_cast %76 : vector<8xf32> to vector<8x1xf32>
    %cst_41 = arith.constant 3.200000e+01 : f32
    %78 = vector.broadcast %cst_41 : f32 to vector<8x1xf32>
    %79 = arith.divf %77, %78 : vector<8x1xf32>
    %80 = vector.broadcast %79 : vector<8x1xf32> to vector<8x32xf32>
    %81 = arith.subf %73, %80 : vector<8x32xf32>
    %82 = arith.mulf %81, %81 : vector<8x32xf32>
    %cst_42 = arith.constant dense<0.000000e+00> : vector<8xf32>
    %83 = vector.multi_reduction <add>, %82, %cst_42 [1] : vector<8x32xf32> to vector<8xf32>
    %84 = vector.shape_cast %83 : vector<8xf32> to vector<8x1xf32>
    %cst_43 = arith.constant 3.200000e+01 : f32
    %85 = vector.broadcast %cst_43 : f32 to vector<8x1xf32>
    %86 = arith.divf %84, %85 : vector<8x1xf32>
    %87 = vector.broadcast %79 : vector<8x1xf32> to vector<8x32xf32>
    %88 = arith.subf %73, %87 : vector<8x32xf32>
    %cst_44 = arith.constant 9.99999974E-6 : f32
    %89 = vector.broadcast %cst_44 : f32 to vector<8x1xf32>
    %90 = arith.addf %86, %89 : vector<8x1xf32>
    %91 = math.rsqrt %90 : vector<8x1xf32>
    %92 = vector.broadcast %91 : vector<8x1xf32> to vector<8x32xf32>
    %93 = arith.mulf %88, %92 : vector<8x32xf32>
    %94 = vector.broadcast %74 : vector<1x32xf32> to vector<8x32xf32>
    %95 = arith.mulf %93, %94 : vector<8x32xf32>
    %96 = vector.broadcast %75 : vector<1x32xf32> to vector<8x32xf32>
    %97 = arith.addf %95, %96 : vector<8x32xf32>
    %98 = vector.broadcast %8 : vector<8x1xf32> to vector<8x32xf32>
    %99 = arith.mulf %97, %98 : vector<8x32xf32>
    %c0_45 = arith.constant 0 : index
    %c0_46 = arith.constant 0 : index
    %c0_47 = arith.constant 0 : index
    %100 = vector.load %arg3[%c0_45, %c0_46, %c0_47] : memref<1x10x32xf32, #tpu.memory_space<vmem>>, vector<1x10x32xf32>
    %101 = vector.shape_cast %100 : vector<1x10x32xf32> to vector<10x32xf32>
    %c0_48 = arith.constant 0 : index
    %c0_49 = arith.constant 0 : index
    %102 = vector.load %arg14[%c0_48, %c0_49] : memref<32x32xf32, #tpu.memory_space<vmem>>, vector<32x32xf32>
    %c0_50 = arith.constant 0 : index
    %c0_51 = arith.constant 0 : index
    %103 = vector.load %arg15[%c0_50, %c0_51] : memref<1x32xf32, #tpu.memory_space<vmem>>, vector<1x32xf32>
    %c0_52 = arith.constant 0 : index
    %c0_53 = arith.constant 0 : index
    %104 = vector.load %arg16[%c0_52, %c0_53] : memref<32x64xf32, #tpu.memory_space<vmem>>, vector<32x64xf32>
    %c0_54 = arith.constant 0 : index
    %c0_55 = arith.constant 0 : index
    %105 = vector.load %arg17[%c0_54, %c0_55] : memref<1x64xf32, #tpu.memory_space<vmem>>, vector<1x64xf32>
    %c0_56 = arith.constant 0 : index
    %c0_57 = arith.constant 0 : index
    %106 = vector.load %arg18[%c0_56, %c0_57] : memref<32x32xf32, #tpu.memory_space<vmem>>, vector<32x32xf32>
    %cst_58 = arith.constant dense<0.000000e+00> : vector<8x32xf32>
    %107 = tpu.matmul %99, %102, %cst_58 {dimension_numbers = #tpu.dot_dimension_numbers<[1], [0], [0], [1], [0, 0, 1, 1], [], []>} : vector<8x32xf32>, vector<32x32xf32>, vector<8x32xf32> -> vector<8x32xf32>
    %108 = vector.broadcast %103 : vector<1x32xf32> to vector<8x32xf32>
    %109 = arith.addf %107, %108 : vector<8x32xf32>
    %cst_59 = arith.constant dense<0.000000e+00> : vector<10x64xf32>
    %110 = tpu.matmul %101, %104, %cst_59 {dimension_numbers = #tpu.dot_dimension_numbers<[1], [0], [0], [1], [0, 0, 1, 1], [], []>} : vector<10x32xf32>, vector<32x64xf32>, vector<10x64xf32> -> vector<10x64xf32>
    %111 = vector.broadcast %105 : vector<1x64xf32> to vector<10x64xf32>
    %112 = arith.addf %110, %111 : vector<10x64xf32>
    %113 = vector.extract_strided_slice %109 {offsets = [0, 0], sizes = [8, 16], strides = [1, 1]} : vector<8x32xf32> to vector<8x16xf32>
    %114 = vector.extract_strided_slice %112 {offsets = [0, 0], sizes = [10, 16], strides = [1, 1]} : vector<10x64xf32> to vector<10x16xf32>
    %115 = vector.extract_strided_slice %112 {offsets = [0, 32], sizes = [10, 16], strides = [1, 1]} : vector<10x64xf32> to vector<10x16xf32>
    %cst_60 = arith.constant dense<0.000000e+00> : vector<8x10xf32>
    %116 = tpu.matmul %113, %114, %cst_60 {dimension_numbers = #tpu.dot_dimension_numbers<[1], [1], [0], [0], [0, 0, 1, 0], [], []>} : vector<8x16xf32>, vector<10x16xf32>, vector<8x10xf32> -> vector<8x10xf32>
    %cst_61 = arith.constant 2.500000e-01 : f32
    %117 = vector.broadcast %cst_61 : f32 to vector<8x10xf32>
    %118 = arith.mulf %116, %117 : vector<8x10xf32>
    %cst_62 = arith.constant dense<0xFF800000> : vector<8xf32>
    %119 = vector.multi_reduction <maximumf>, %118, %cst_62 [1] : vector<8x10xf32> to vector<8xf32>
    %120 = vector.shape_cast %119 : vector<8xf32> to vector<8x1xf32>
    %121 = vector.broadcast %120 : vector<8x1xf32> to vector<8x10xf32>
    %122 = arith.subf %118, %121 : vector<8x10xf32>
    %123 = math.exp %122 : vector<8x10xf32>
    %cst_63 = arith.constant dense<0.000000e+00> : vector<8xf32>
    %124 = vector.multi_reduction <add>, %123, %cst_63 [1] : vector<8x10xf32> to vector<8xf32>
    %125 = vector.shape_cast %124 : vector<8xf32> to vector<8x1xf32>
    %126 = tpu.reciprocal %125 {approx = true} : vector<8x1xf32> -> vector<8x1xf32>
    %127 = vector.broadcast %126 : vector<8x1xf32> to vector<8x10xf32>
    %128 = arith.mulf %123, %127 : vector<8x10xf32>
    %cst_64 = arith.constant dense<0.000000e+00> : vector<8x16xf32>
    %129 = tpu.matmul %128, %115, %cst_64 {dimension_numbers = #tpu.dot_dimension_numbers<[1], [0], [0], [1], [0, 0, 1, 1], [], []>} : vector<8x10xf32>, vector<10x16xf32>, vector<8x16xf32> -> vector<8x16xf32>
    %130 = vector.extract_strided_slice %109 {offsets = [0, 16], sizes = [8, 16], strides = [1, 1]} : vector<8x32xf32> to vector<8x16xf32>
    %131 = vector.extract_strided_slice %112 {offsets = [0, 16], sizes = [10, 16], strides = [1, 1]} : vector<10x64xf32> to vector<10x16xf32>
    %132 = vector.extract_strided_slice %112 {offsets = [0, 48], sizes = [10, 16], strides = [1, 1]} : vector<10x64xf32> to vector<10x16xf32>
    %cst_65 = arith.constant dense<0.000000e+00> : vector<8x10xf32>
    %133 = tpu.matmul %130, %131, %cst_65 {dimension_numbers = #tpu.dot_dimension_numbers<[1], [1], [0], [0], [0, 0, 1, 0], [], []>} : vector<8x16xf32>, vector<10x16xf32>, vector<8x10xf32> -> vector<8x10xf32>
    %cst_66 = arith.constant 2.500000e-01 : f32
    %134 = vector.broadcast %cst_66 : f32 to vector<8x10xf32>
    %135 = arith.mulf %133, %134 : vector<8x10xf32>
    %cst_67 = arith.constant dense<0xFF800000> : vector<8xf32>
    %136 = vector.multi_reduction <maximumf>, %135, %cst_67 [1] : vector<8x10xf32> to vector<8xf32>
    %137 = vector.shape_cast %136 : vector<8xf32> to vector<8x1xf32>
    %138 = vector.broadcast %137 : vector<8x1xf32> to vector<8x10xf32>
    %139 = arith.subf %135, %138 : vector<8x10xf32>
    %140 = math.exp %139 : vector<8x10xf32>
    %cst_68 = arith.constant dense<0.000000e+00> : vector<8xf32>
    %141 = vector.multi_reduction <add>, %140, %cst_68 [1] : vector<8x10xf32> to vector<8xf32>
    %142 = vector.shape_cast %141 : vector<8xf32> to vector<8x1xf32>
    %143 = tpu.reciprocal %142 {approx = true} : vector<8x1xf32> -> vector<8x1xf32>
    %144 = vector.broadcast %143 : vector<8x1xf32> to vector<8x10xf32>
    %145 = arith.mulf %140, %144 : vector<8x10xf32>
    %cst_69 = arith.constant dense<0.000000e+00> : vector<8x16xf32>
    %146 = tpu.matmul %145, %132, %cst_69 {dimension_numbers = #tpu.dot_dimension_numbers<[1], [0], [0], [1], [0, 0, 1, 1], [], []>} : vector<8x10xf32>, vector<10x16xf32>, vector<8x16xf32> -> vector<8x16xf32>
    %147 = tpu.concatenate %129, %146 in 1 : vector<8x16xf32>, vector<8x16xf32> -> vector<8x32xf32>
    %cst_70 = arith.constant dense<0.000000e+00> : vector<8x32xf32>
    %148 = tpu.matmul %147, %106, %cst_70 {dimension_numbers = #tpu.dot_dimension_numbers<[1], [0], [0], [1], [0, 0, 1, 1], [], []>} : vector<8x32xf32>, vector<32x32xf32>, vector<8x32xf32> -> vector<8x32xf32>
    %c0_71 = arith.constant 0 : index
    %c0_72 = arith.constant 0 : index
    %149 = vector.load %arg19[%c0_71, %c0_72] : memref<1x32xf32, #tpu.memory_space<vmem>>, vector<1x32xf32>
    %150 = vector.broadcast %149 : vector<1x32xf32> to vector<8x32xf32>
    %151 = arith.addf %148, %150 : vector<8x32xf32>
    %152 = arith.addf %151, %99 : vector<8x32xf32>
    %c0_73 = arith.constant 0 : index
    %c0_74 = arith.constant 0 : index
    %153 = vector.load %arg20[%c0_73, %c0_74] : memref<1x32xf32, #tpu.memory_space<vmem>>, vector<1x32xf32>
    %c0_75 = arith.constant 0 : index
    %c0_76 = arith.constant 0 : index
    %154 = vector.load %arg21[%c0_75, %c0_76] : memref<1x32xf32, #tpu.memory_space<vmem>>, vector<1x32xf32>
    %cst_77 = arith.constant dense<0.000000e+00> : vector<8xf32>
    %155 = vector.multi_reduction <add>, %152, %cst_77 [1] : vector<8x32xf32> to vector<8xf32>
    %156 = vector.shape_cast %155 : vector<8xf32> to vector<8x1xf32>
    %cst_78 = arith.constant 3.200000e+01 : f32
    %157 = vector.broadcast %cst_78 : f32 to vector<8x1xf32>
    %158 = arith.divf %156, %157 : vector<8x1xf32>
    %159 = vector.broadcast %158 : vector<8x1xf32> to vector<8x32xf32>
    %160 = arith.subf %152, %159 : vector<8x32xf32>
    %161 = arith.mulf %160, %160 : vector<8x32xf32>
    %cst_79 = arith.constant dense<0.000000e+00> : vector<8xf32>
    %162 = vector.multi_reduction <add>, %161, %cst_79 [1] : vector<8x32xf32> to vector<8xf32>
    %163 = vector.shape_cast %162 : vector<8xf32> to vector<8x1xf32>
    %cst_80 = arith.constant 3.200000e+01 : f32
    %164 = vector.broadcast %cst_80 : f32 to vector<8x1xf32>
    %165 = arith.divf %163, %164 : vector<8x1xf32>
    %166 = vector.broadcast %158 : vector<8x1xf32> to vector<8x32xf32>
    %167 = arith.subf %152, %166 : vector<8x32xf32>
    %cst_81 = arith.constant 9.99999974E-6 : f32
    %168 = vector.broadcast %cst_81 : f32 to vector<8x1xf32>
    %169 = arith.addf %165, %168 : vector<8x1xf32>
    %170 = math.rsqrt %169 : vector<8x1xf32>
    %171 = vector.broadcast %170 : vector<8x1xf32> to vector<8x32xf32>
    %172 = arith.mulf %167, %171 : vector<8x32xf32>
    %173 = vector.broadcast %153 : vector<1x32xf32> to vector<8x32xf32>
    %174 = arith.mulf %172, %173 : vector<8x32xf32>
    %175 = vector.broadcast %154 : vector<1x32xf32> to vector<8x32xf32>
    %176 = arith.addf %174, %175 : vector<8x32xf32>
    %177 = vector.broadcast %8 : vector<8x1xf32> to vector<8x32xf32>
    %178 = arith.mulf %176, %177 : vector<8x32xf32>
    %c0_82 = arith.constant 0 : index
    %c0_83 = arith.constant 0 : index
    %179 = vector.load %arg22[%c0_82, %c0_83] : memref<32x64xf32, #tpu.memory_space<vmem>>, vector<32x64xf32>
    %cst_84 = arith.constant dense<0.000000e+00> : vector<8x64xf32>
    %180 = tpu.matmul %178, %179, %cst_84 {dimension_numbers = #tpu.dot_dimension_numbers<[1], [0], [0], [1], [0, 0, 1, 1], [], []>} : vector<8x32xf32>, vector<32x64xf32>, vector<8x64xf32> -> vector<8x64xf32>
    %c0_85 = arith.constant 0 : index
    %c0_86 = arith.constant 0 : index
    %181 = vector.load %arg23[%c0_85, %c0_86] : memref<1x64xf32, #tpu.memory_space<vmem>>, vector<1x64xf32>
    %182 = vector.broadcast %181 : vector<1x64xf32> to vector<8x64xf32>
    %183 = arith.addf %180, %182 : vector<8x64xf32>
    %cst_87 = arith.constant 0.000000e+00 : f32
    %184 = vector.broadcast %cst_87 : f32 to vector<8x64xf32>
    %185 = arith.maximumf %183, %184 : vector<8x64xf32>
    %c0_88 = arith.constant 0 : index
    %c0_89 = arith.constant 0 : index
    %186 = vector.load %arg24[%c0_88, %c0_89] : memref<64x32xf32, #tpu.memory_space<vmem>>, vector<64x32xf32>
    %cst_90 = arith.constant dense<0.000000e+00> : vector<8x32xf32>
    %187 = tpu.matmul %185, %186, %cst_90 {dimension_numbers = #tpu.dot_dimension_numbers<[1], [0], [0], [1], [0, 0, 1, 1], [], []>} : vector<8x64xf32>, vector<64x32xf32>, vector<8x32xf32> -> vector<8x32xf32>
    %c0_91 = arith.constant 0 : index
    %c0_92 = arith.constant 0 : index
    %188 = vector.load %arg25[%c0_91, %c0_92] : memref<1x32xf32, #tpu.memory_space<vmem>>, vector<1x32xf32>
    %189 = vector.broadcast %188 : vector<1x32xf32> to vector<8x32xf32>
    %190 = arith.addf %187, %189 : vector<8x32xf32>
    %191 = arith.addf %190, %178 : vector<8x32xf32>
    %c0_93 = arith.constant 0 : index
    %c0_94 = arith.constant 0 : index
    %192 = vector.load %arg26[%c0_93, %c0_94] : memref<1x32xf32, #tpu.memory_space<vmem>>, vector<1x32xf32>
    %c0_95 = arith.constant 0 : index
    %c0_96 = arith.constant 0 : index
    %193 = vector.load %arg27[%c0_95, %c0_96] : memref<1x32xf32, #tpu.memory_space<vmem>>, vector<1x32xf32>
    %cst_97 = arith.constant dense<0.000000e+00> : vector<8xf32>
    %194 = vector.multi_reduction <add>, %191, %cst_97 [1] : vector<8x32xf32> to vector<8xf32>
    %195 = vector.shape_cast %194 : vector<8xf32> to vector<8x1xf32>
    %cst_98 = arith.constant 3.200000e+01 : f32
    %196 = vector.broadcast %cst_98 : f32 to vector<8x1xf32>
    %197 = arith.divf %195, %196 : vector<8x1xf32>
    %198 = vector.broadcast %197 : vector<8x1xf32> to vector<8x32xf32>
    %199 = arith.subf %191, %198 : vector<8x32xf32>
    %200 = arith.mulf %199, %199 : vector<8x32xf32>
    %cst_99 = arith.constant dense<0.000000e+00> : vector<8xf32>
    %201 = vector.multi_reduction <add>, %200, %cst_99 [1] : vector<8x32xf32> to vector<8xf32>
    %202 = vector.shape_cast %201 : vector<8xf32> to vector<8x1xf32>
    %cst_100 = arith.constant 3.200000e+01 : f32
    %203 = vector.broadcast %cst_100 : f32 to vector<8x1xf32>
    %204 = arith.divf %202, %203 : vector<8x1xf32>
    %205 = vector.broadcast %197 : vector<8x1xf32> to vector<8x32xf32>
    %206 = arith.subf %191, %205 : vector<8x32xf32>
    %cst_101 = arith.constant 9.99999974E-6 : f32
    %207 = vector.broadcast %cst_101 : f32 to vector<8x1xf32>
    %208 = arith.addf %204, %207 : vector<8x1xf32>
    %209 = math.rsqrt %208 : vector<8x1xf32>
    %210 = vector.broadcast %209 : vector<8x1xf32> to vector<8x32xf32>
    %211 = arith.mulf %206, %210 : vector<8x32xf32>
    %212 = vector.broadcast %192 : vector<1x32xf32> to vector<8x32xf32>
    %213 = arith.mulf %211, %212 : vector<8x32xf32>
    %214 = vector.broadcast %193 : vector<1x32xf32> to vector<8x32xf32>
    %215 = arith.addf %213, %214 : vector<8x32xf32>
    %216 = vector.broadcast %8 : vector<8x1xf32> to vector<8x32xf32>
    %217 = arith.mulf %215, %216 : vector<8x32xf32>
    %c0_102 = arith.constant 0 : index
    %c0_103 = arith.constant 0 : index
    %c0_104 = arith.constant 0 : index
    %218 = vector.load %arg28[%c0_102, %c0_103, %c0_104] : memref<1x8x32xf32, #tpu.memory_space<vmem>>, vector<1x8x32xf32>
    %219 = vector.shape_cast %218 : vector<1x8x32xf32> to vector<8x32xf32>
    %220 = vector.shape_cast %217 : vector<8x32xf32> to vector<1x8x32xf32>
    tpu.vector_store %arg28[%c0_102, %c0_103, %c0_104], %220 {strides = array<i32>} : memref<1x8x32xf32, #tpu.memory_space<vmem>>, vector<1x8x32xf32>,
    return
  }
  func.func @transform_0(%arg0: i32, %arg1: i32) -> (i32, i32, i32) {
    %c0_i32 = arith.constant 0 : i32
    %c0_i32_0 = arith.constant 0 : i32
    %c0_i32_1 = arith.constant 0 : i32
    return %arg0, %c0_i32, %c0_i32_0 : i32, i32, i32
  }
  func.func @transform_1(%arg0: i32, %arg1: i32) -> (i32, i32, i32) {
    %c0_i32 = arith.constant 0 : i32
    %c0_i32_0 = arith.constant 0 : i32
    %c0_i32_1 = arith.constant 0 : i32
    return %arg0, %c0_i32, %c0_i32_0 : i32, i32, i32
  }
  func.func @transform_2(%arg0: i32, %arg1: i32) -> (i32, i32, i32) {
    %c0_i32 = arith.constant 0 : i32
    %c0_i32_0 = arith.constant 0 : i32
    %c0_i32_1 = arith.constant 0 : i32
    return %arg0, %c0_i32, %c0_i32_0 : i32, i32, i32
  }
  func.func @transform_3(%arg0: i32, %arg1: i32) -> (i32, i32, i32) {
    %c0_i32 = arith.constant 0 : i32
    %c0_i32_0 = arith.constant 0 : i32
    return %arg0, %arg1, %c0_i32 : i32, i32, i32
  }
  func.func @transform_4(%arg0: i32, %arg1: i32) -> (i32, i32) {
    %c0_i32 = arith.constant 0 : i32
    %c0_i32_0 = arith.constant 0 : i32
    %c0_i32_1 = arith.constant 0 : i32
    return %c0_i32, %c0_i32_0 : i32, i32
  }
  func.func @transform_5(%arg0: i32, %arg1: i32) -> (i32, i32) {
    %c0_i32 = arith.constant 0 : i32
    %c0_i32_0 = arith.constant 0 : i32
    %c0_i32_1 = arith.constant 0 : i32
    return %c0_i32, %c0_i32_0 : i32, i32
  }
  func.func @transform_6(%arg0: i32, %arg1: i32) -> (i32, i32) {
    %c0_i32 = arith.constant 0 : i32
    %c0_i32_0 = arith.constant 0 : i32
    %c0_i32_1 = arith.constant 0 : i32
    return %c0_i32, %c0_i32_0 : i32, i32
  }
  func.func @transform_7(%arg0: i32, %arg1: i32) -> (i32, i32) {
    %c0_i32 = arith.constant 0 : i32
    %c0_i32_0 = arith.constant 0 : i32
    %c0_i32_1 = arith.constant 0 : i32
    return %c0_i32, %c0_i32_0 : i32, i32
  }
  func.func @transform_8(%arg0: i32, %arg1: i32) -> (i32, i32) {
    %c0_i32 = arith.constant 0 : i32
    %c0_i32_0 = arith.constant 0 : i32
    %c0_i32_1 = arith.constant 0 : i32
    return %c0_i32, %c0_i32_0 : i32, i32
  }
  func.func @transform_9(%arg0: i32, %arg1: i32) -> (i32, i32) {
    %c0_i32 = arith.constant 0 : i32
    %c0_i32_0 = arith.constant 0 : i32
    %c0_i32_1 = arith.constant 0 : i32
    return %c0_i32, %c0_i32_0 : i32, i32
  }
  func.func @transform_10(%arg0: i32, %arg1: i32) -> (i32, i32) {
    %c0_i32 = arith.constant 0 : i32
    %c0_i32_0 = arith.constant 0 : i32
    %c0_i32_1 = arith.constant 0 : i32
    return %c0_i32, %c0_i32_0 : i32, i32
  }
  func.func @transform_11(%arg0: i32, %arg1: i32) -> (i32, i32) {
    %c0_i32 = arith.constant 0 : i32
    %c0_i32_0 = arith.constant 0 : i32
    %c0_i32_1 = arith.constant 0 : i32
    return %c0_i32, %c0_i32_0 : i32, i32
  }
  func.func @transform_12(%arg0: i32, %arg1: i32) -> (i32, i32) {
    %c0_i32 = arith.constant 0 : i32
    %c0_i32_0 = arith.constant 0 : i32
    %c0_i32_1 = arith.constant 0 : i32
    return %c0_i32, %c0_i32_0 : i32, i32
  }
  func.func @transform_13(%arg0: i32, %arg1: i32) -> (i32, i32) {
    %c0_i32 = arith.constant 0 : i32
    %c0_i32_0 = arith.constant 0 : i32
    %c0_i32_1 = arith.constant 0 : i32
    return %c0_i32, %c0_i32_0 : i32, i32
  }
  func.func @transform_14(%arg0: i32, %arg1: i32) -> (i32, i32) {
    %c0_i32 = arith.constant 0 : i32
    %c0_i32_0 = arith.constant 0 : i32
    %c0_i32_1 = arith.constant 0 : i32
    return %c0_i32, %c0_i32_0 : i32, i32
  }
  func.func @transform_15(%arg0: i32, %arg1: i32) -> (i32, i32) {
    %c0_i32 = arith.constant 0 : i32
    %c0_i32_0 = arith.constant 0 : i32
    %c0_i32_1 = arith.constant 0 : i32
    return %c0_i32, %c0_i32_0 : i32, i32
  }
  func.func @transform_16(%arg0: i32, %arg1: i32) -> (i32, i32) {
    %c0_i32 = arith.constant 0 : i32
    %c0_i32_0 = arith.constant 0 : i32
    %c0_i32_1 = arith.constant 0 : i32
    return %c0_i32, %c0_i32_0 : i32, i32
  }
  func.func @transform_17(%arg0: i32, %arg1: i32) -> (i32, i32) {
    %c0_i32 = arith.constant 0 : i32
    %c0_i32_0 = arith.constant 0 : i32
    %c0_i32_1 = arith.constant 0 : i32
    return %c0_i32, %c0_i32_0 : i32, i32
  }
  func.func @transform_18(%arg0: i32, %arg1: i32) -> (i32, i32) {
    %c0_i32 = arith.constant 0 : i32
    %c0_i32_0 = arith.constant 0 : i32
    %c0_i32_1 = arith.constant 0 : i32
    return %c0_i32, %c0_i32_0 : i32, i32
  }
  func.func @transform_19(%arg0: i32, %arg1: i32) -> (i32, i32) {
    %c0_i32 = arith.constant 0 : i32
    %c0_i32_0 = arith.constant 0 : i32
    %c0_i32_1 = arith.constant 0 : i32
    return %c0_i32, %c0_i32_0 : i32, i32
  }
  func.func @transform_20(%arg0: i32, %arg1: i32) -> (i32, i32) {
    %c0_i32 = arith.constant 0 : i32
    %c0_i32_0 = arith.constant 0 : i32
    %c0_i32_1 = arith.constant 0 : i32
    return %c0_i32, %c0_i32_0 : i32, i32
  }
  func.func @transform_21(%arg0: i32, %arg1: i32) -> (i32, i32) {
    %c0_i32 = arith.constant 0 : i32
    %c0_i32_0 = arith.constant 0 : i32
    %c0_i32_1 = arith.constant 0 : i32
    return %c0_i32, %c0_i32_0 : i32, i32
  }
  func.func @transform_22(%arg0: i32, %arg1: i32) -> (i32, i32) {
    %c0_i32 = arith.constant 0 : i32
    %c0_i32_0 = arith.constant 0 : i32
    %c0_i32_1 = arith.constant 0 : i32
    return %c0_i32, %c0_i32_0 : i32, i32
  }
  func.func @transform_23(%arg0: i32, %arg1: i32) -> (i32, i32) {
    %c0_i32 = arith.constant 0 : i32
    %c0_i32_0 = arith.constant 0 : i32
    %c0_i32_1 = arith.constant 0 : i32
    return %c0_i32, %c0_i32_0 : i32, i32
  }
  func.func @transform_24(%arg0: i32, %arg1: i32) -> (i32, i32) {
    %c0_i32 = arith.constant 0 : i32
    %c0_i32_0 = arith.constant 0 : i32
    %c0_i32_1 = arith.constant 0 : i32
    return %c0_i32, %c0_i32_0 : i32, i32
  }
  func.func @transform_25(%arg0: i32, %arg1: i32) -> (i32, i32) {
    %c0_i32 = arith.constant 0 : i32
    %c0_i32_0 = arith.constant 0 : i32
    %c0_i32_1 = arith.constant 0 : i32
    return %c0_i32, %c0_i32_0 : i32, i32
  }
  func.func @transform_26(%arg0: i32, %arg1: i32) -> (i32, i32, i32) {
    %c0_i32 = arith.constant 0 : i32
    %c0_i32_0 = arith.constant 0 : i32
    return %arg0, %arg1, %c0_i32 : i32, i32, i32
  }
}

</mosaic_0001>

<llo_original>
// kernel: tpu_custom_call.1
$region0: #{tpu_custom_call.1}
  #allocation0 [shape = 'u32[]', space=smem, size = 0x4, offset = 0x4, fixed_abs, tag = 'smem constant byte address 0x4 - core index']
  #allocation1 [shape = 'u32[72,128]{1,0:T(1,128)}', space=vmem, size = 0x9000, scoped, tag = 'internal scratch']
  %s0 = inlined_call_operand.hbm [shape: f32[2,8,32], index: 0, kind: input, shape index: {}]
  %s1 = inlined_call_operand.vmem [shape: f32[2,10,32], index: 1, kind: input, shape index: {}]
  %s2 = inlined_call_operand.vmem [shape: f32[2,1,8], index: 2, kind: input, shape index: {}]
  %s3 = inlined_call_operand.vmem [shape: f32[2,8,1], index: 3, kind: input, shape index: {}]
  %s4 = inlined_call_operand.vmem [shape: f32[32,32], index: 4, kind: input, shape index: {}]
  %s5 = inlined_call_operand.vmem [shape: f32[1,32], index: 5, kind: input, shape index: {}]
  %s6 = inlined_call_operand.vmem [shape: f32[32,64], index: 6, kind: input, shape index: {}]
  %s7 = inlined_call_operand.vmem [shape: f32[1,64], index: 7, kind: input, shape index: {}]
  %s8 = inlined_call_operand.vmem [shape: f32[32,32], index: 8, kind: input, shape index: {}]
  %s9 = inlined_call_operand.vmem [shape: f32[1,32], index: 9, kind: input, shape index: {}]
  %s10 = inlined_call_operand.vmem [shape: f32[1,32], index: 10, kind: input, shape index: {}]
  %s11 = inlined_call_operand.vmem [shape: f32[1,32], index: 11, kind: input, shape index: {}]
  %s12 = inlined_call_operand.vmem [shape: f32[32,32], index: 12, kind: input, shape index: {}]
  %s13 = inlined_call_operand.vmem [shape: f32[1,32], index: 13, kind: input, shape index: {}]
  %s14 = inlined_call_operand.hbm [shape: f32[32,64], index: 14, kind: input, shape index: {}]
  %s15 = inlined_call_operand.vmem [shape: f32[1,64], index: 15, kind: input, shape index: {}]
  %s16 = inlined_call_operand.hbm [shape: f32[32,32], index: 16, kind: input, shape index: {}]
  %s17 = inlined_call_operand.vmem [shape: f32[1,32], index: 17, kind: input, shape index: {}]
  %s18 = inlined_call_operand.vmem [shape: f32[1,32], index: 18, kind: input, shape index: {}]
  %s19 = inlined_call_operand.vmem [shape: f32[1,32], index: 19, kind: input, shape index: {}]
  %s20 = inlined_call_operand.hbm [shape: f32[32,64], index: 20, kind: input, shape index: {}]
  %s21 = inlined_call_operand.vmem [shape: f32[1,64], index: 21, kind: input, shape index: {}]
  %s22 = inlined_call_operand.vmem [shape: f32[64,32], index: 22, kind: input, shape index: {}]
  %s23 = inlined_call_operand.vmem [shape: f32[1,32], index: 23, kind: input, shape index: {}]
  %s24 = inlined_call_operand.vmem [shape: f32[1,32], index: 24, kind: input, shape index: {}]
  %s25 = inlined_call_operand.vmem [shape: f32[1,32], index: 25, kind: input, shape index: {}]
  %s26 = inlined_call_operand.hbm [shape: f32[2,8,32], index: 26, kind: output, shape index: {}]
  %s27 = sld [smem:[#allocation0]]
  $region153: #{tpu_custom_call.1} parent=0
    _
  %s29 = ssub.s32 1, %s27
  %s30 = scalar_select 0, %s29, %s27
  $region1: #{tpu_custom_call.1} parent=0
    #allocation2 [shape = 'u8[8192]{0}', space=vmem, size = 0x2000, scoped, tag = 'input window, operand 0']
    #allocation3 [shape = 's32[2]{0}', space=sflag, size = 0x8, scoped, tag = 'scoped memory for tpu_custom_call.1']
    #allocation4 [shape = 's32[2]{0}', space=sflag, size = 0x8, scoped, tag = 'scoped memory for tpu_custom_call.1']
    #allocation5 [shape = 'u8[16384]{0}', space=vmem, size = 0x4000, scoped, tag = 'input window, operand 14, single buffered']
    #allocation6 [shape = 's32[1]{0}', space=sflag, size = 0x4, scoped, tag = 'scoped memory for tpu_custom_call.1']
    #allocation7 [shape = 'u8[16384]{0}', space=vmem, size = 0x4000, scoped, tag = 'input window, operand 16, single buffered']
    #allocation8 [shape = 'u8[16384]{0}', space=vmem, size = 0x4000, scoped, tag = 'input window, operand 20, single buffered']
    #allocation9 [shape = 's32[1]{0}', space=sflag, size = 0x4, scoped, tag = 'scoped memory for tpu_custom_call.1']
    #allocation10 [shape = 'u8[8192]{0}', space=vmem, size = 0x2000, scoped, tag = 'output window, operand 0']
    %31 = vsyncpa [#allocation3], 0
    %s32 = scalar_lea.sflag [#allocation3], 1
    %33 = vsyncpa %s32, 0
    %34 = vsyncpa [#allocation6], 0
    %35 = vsyncpa [#allocation9], 0
    %36 = vsyncpa [#allocation4], 0
    %s37 = scalar_lea.sflag [#allocation4], 1
    %38 = vsyncpa %s37, 0
    loop: start=0, step=1, limit=4
    $region2: #{tpu_custom_call.1} parent=1 // loop_pre_header
      _
    $region3: #{tpu_custom_call.1} parent=1 // loop_header
      %s40 = sphi 0, %s44
      %p41 = scmp.ge.s32.totalorder %s40, 4
      %s47 = sphi 0, %s59
      %s48 = sphi 0, %s55
      %s49 = sphi 0, %s47
      %s50 = sphi 0, %s48
      %s51 = sphi 0, %s49
      %s52 = sphi 0, %s50
      %s62 = sphi 0, %s64
      %s65 = sphi 0, %s62
      %s66 = sphi 0, %s65
      %s82 = sphi 0, %s66
      %s88 = sphi 0, %s90
      %s91 = sphi 0, %s88
      %s92 = sphi 0, %s91
      %s108 = sphi 0, %s92
      %s114 = sphi 0, %s116
      %s117 = sphi 0, %s114
      %s118 = sphi 0, %s117
      %s134 = sphi 0, %s118
      %s142 = sphi 0, %s144
      %s145 = sphi 0, %s142
      %s146 = sphi 0, %s145
      %s162 = sphi 0, %s146
      %s166 = sphi 0, %s166
      %s168 = sphi 0, %s166
      %s169 = sphi 0, %s168
      %s183 = sphi 0, %s169
      %s187 = sphi 0, %s187
      %s189 = sphi 0, %s187
      %s190 = sphi 0, %s189
      %s204 = sphi 0, %s190
      %s208 = sphi 0, %s208
      %s210 = sphi 0, %s208
      %s211 = sphi 0, %s210
      %s225 = sphi 0, %s211
      %s229 = sphi 0, %s229
      %s231 = sphi 0, %s229
      %s232 = sphi 0, %s231
      %s246 = sphi 0, %s232
      %s250 = sphi 0, %s250
      %s252 = sphi 0, %s250
      %s253 = sphi 0, %s252
      %s267 = sphi 0, %s253
      %s271 = sphi 0, %s271
      %s273 = sphi 0, %s271
      %s274 = sphi 0, %s273
      %s288 = sphi 0, %s274
      %s292 = sphi 0, %s292
      %s294 = sphi 0, %s292
      %s295 = sphi 0, %s294
      %s309 = sphi 0, %s295
      %s313 = sphi 0, %s313
      %s315 = sphi 0, %s313
      %s316 = sphi 0, %s315
      %s330 = sphi 0, %s316
      %s334 = sphi 0, %s334
      %s336 = sphi 0, %s334
      %s337 = sphi 0, %s336
      %s351 = sphi 0, %s337
      %s355 = sphi 0, %s355
      %s357 = sphi 0, %s355
      %s358 = sphi 0, %s357
      %s372 = sphi 0, %s358
      %s376 = sphi 0, %s376
      %s378 = sphi 0, %s376
      %s379 = sphi 0, %s378
      %s393 = sphi 0, %s379
      %s397 = sphi 0, %s397
      %s399 = sphi 0, %s397
      %s400 = sphi 0, %s399
      %s414 = sphi 0, %s400
      %s418 = sphi 0, %s418
      %s420 = sphi 0, %s418
      %s421 = sphi 0, %s420
      %s435 = sphi 0, %s421
      %s439 = sphi 0, %s439
      %s441 = sphi 0, %s439
      %s442 = sphi 0, %s441
      %s456 = sphi 0, %s442
      %s460 = sphi 0, %s460
      %s462 = sphi 0, %s460
      %s463 = sphi 0, %s462
      %s477 = sphi 0, %s463
      %s481 = sphi 0, %s481
      %s483 = sphi 0, %s481
      %s484 = sphi 0, %s483
      %s498 = sphi 0, %s484
      %s502 = sphi 0, %s502
      %s504 = sphi 0, %s502
      %s505 = sphi 0, %s504
      %s519 = sphi 0, %s505
      %s523 = sphi 0, %s523
      %s525 = sphi 0, %s523
      %s526 = sphi 0, %s525
      %s540 = sphi 0, %s526
      %s544 = sphi 0, %s544
      %s546 = sphi 0, %s544
      %s547 = sphi 0, %s546
      %s561 = sphi 0, %s547
      %s565 = sphi 0, %s565
      %s567 = sphi 0, %s565
      %s568 = sphi 0, %s567
      %s582 = sphi 0, %s568
      %s586 = sphi 0, %s586
      %s588 = sphi 0, %s586
      %s589 = sphi 0, %s588
      %s603 = sphi 0, %s589
      %s607 = sphi 0, %s607
      %s609 = sphi 0, %s607
      %s610 = sphi 0, %s609
      %s624 = sphi 0, %s610
      %s632 = sphi 0, %s634
      %s635 = sphi 0, %s632
      %s636 = sphi 0, %s635
      %s652 = sphi 0, %s636
    $region4: #{tpu_custom_call.1} parent=1 // loop_header_branch
      %43 = sbr.rel (%p41) target = $region8
    $region5: #{tpu_custom_call.1} parent=1 // loop_body
      %s45 = ssub.s32 %s40, 1
      %s46 = ssub.s32 %s40, 2
      %s53 = sadd.s32 1, %s48
      %p54 = scmp.ge.s32.totalorder %s53, 1
      %s55 = scalar_select %p54, 0, %s53
      %s56 = sadd.s32 1, %s47
      %s57 = scalar_select %p54, %s56, %s47
      %p58 = scmp.ge.s32.totalorder %s57, 2
      %s59 = scalar_select %p58, 0, %s57
      %s60 = ssub.s32 %s47, %s59
      %p61 = scmp.eq.s32.totalorder %s60, 0
      %s63 = sadd.s32 %s62, 1
      %s64 = scalar_select %p61, %s62, %s63
      %p67 = pneg %p61
      %p68 = scmp.eq.s32.totalorder %s40, 1
      %p69 = por %p67, %p68
      %p70 = scmp.ne.s32.totalorder %s62, %s65
      %p71 = scmp.eq.s32.totalorder %s40, 0
      %p72 = por %p70, %p71
      %p73 = scmp.ne.s32.totalorder %s62, %s65
      %p74 = scmp.eq.s32.totalorder %s45, 1
      %p75 = por %p73, %p74
      %p76 = scmp.ne.s32.totalorder %s65, %s66
      %p77 = scmp.eq.s32.totalorder %s45, 0
      %p78 = por %p76, %p77
      %p79 = scmp.ne.s32.totalorder %s65, %s66
      %p80 = scmp.eq.s32.totalorder %s46, 1
      %p81 = por %p79, %p80
      %p83 = scmp.ne.s32.totalorder %s66, %s82
      %p84 = scmp.eq.s32.totalorder %s46, 0
      %p85 = por %p83, %p84
      %s86 = ssub.s32 %s47, %s59
      %p87 = scmp.eq.s32.totalorder %s86, 0
      %s89 = sadd.s32 %s88, 1
      %s90 = scalar_select %p87, %s88, %s89
      %p93 = pneg %p87
      %p94 = scmp.eq.s32.totalorder %s40, 1
      %p95 = por %p93, %p94
      %p96 = scmp.ne.s32.totalorder %s88, %s91
      %p97 = scmp.eq.s32.totalorder %s40, 0
      %p98 = por %p96, %p97
      %p99 = scmp.ne.s32.totalorder %s88, %s91
      %p100 = scmp.eq.s32.totalorder %s45, 1
      %p101 = por %p99, %p100
      %p102 = scmp.ne.s32.totalorder %s91, %s92
      %p103 = scmp.eq.s32.totalorder %s45, 0
      %p104 = por %p102, %p103
      %p105 = scmp.ne.s32.totalorder %s91, %s92
      %p106 = scmp.eq.s32.totalorder %s46, 1
      %p107 = por %p105, %p106
      %p109 = scmp.ne.s32.totalorder %s92, %s108
      %p110 = scmp.eq.s32.totalorder %s46, 0
      %p111 = por %p109, %p110
      %s112 = ssub.s32 %s47, %s59
      %p113 = scmp.eq.s32.totalorder %s112, 0
      %s115 = sadd.s32 %s114, 1
      %s116 = scalar_select %p113, %s114, %s115
      %p119 = pneg %p113
      %p120 = scmp.eq.s32.totalorder %s40, 1
      %p121 = por %p119, %p120
      %p122 = scmp.ne.s32.totalorder %s114, %s117
      %p123 = scmp.eq.s32.totalorder %s40, 0
      %p124 = por %p122, %p123
      %p125 = scmp.ne.s32.totalorder %s114, %s117
      %p126 = scmp.eq.s32.totalorder %s45, 1
      %p127 = por %p125, %p126
      %p128 = scmp.ne.s32.totalorder %s117, %s118
      %p129 = scmp.eq.s32.totalorder %s45, 0
      %p130 = por %p128, %p129
      %p131 = scmp.ne.s32.totalorder %s117, %s118
      %p132 = scmp.eq.s32.totalorder %s46, 1
      %p133 = por %p131, %p132
      %p135 = scmp.ne.s32.totalorder %s118, %s134
      %p136 = scmp.eq.s32.totalorder %s46, 0
      %p137 = por %p135, %p136
      %s138 = ssub.s32 %s47, %s59
      %s139 = ssub.s32 %s48, %s55
      %s140 = sor.u32 %s138, %s139
      %p141 = scmp.eq.s32.totalorder %s140, 0
      %s143 = sadd.s32 %s142, 1
      %s144 = scalar_select %p141, %s142, %s143
      %p147 = pneg %p141
      %p148 = scmp.eq.s32.totalorder %s40, 1
      %p149 = por %p147, %p148
      %p150 = scmp.ne.s32.totalorder %s142, %s145
      %p151 = scmp.eq.s32.totalorder %s40, 0
      %p152 = por %p150, %p151
      %p153 = scmp.ne.s32.totalorder %s142, %s145
      %p154 = scmp.eq.s32.totalorder %s45, 1
      %p155 = por %p153, %p154
      %p156 = scmp.ne.s32.totalorder %s145, %s146
      %p157 = scmp.eq.s32.totalorder %s45, 0
      %p158 = por %p156, %p157
      %p159 = scmp.ne.s32.totalorder %s145, %s146
      %p160 = scmp.eq.s32.totalorder %s46, 1
      %p161 = por %p159, %p160
      %p163 = scmp.ne.s32.totalorder %s146, %s162
      %p164 = scmp.eq.s32.totalorder %s46, 0
      %p165 = por %p163, %p164
      %s167 = sadd.s32 %s166, 1
      %p170 = scmp.eq.s32.totalorder %s40, 1
      %p171 = scmp.ne.s32.totalorder %s166, %s168
      %p172 = scmp.eq.s32.totalorder %s40, 0
      %p173 = por %p171, %p172
      %p174 = scmp.ne.s32.totalorder %s166, %s168
      %p175 = scmp.eq.s32.totalorder %s45, 1
      %p176 = por %p174, %p175
      %p177 = scmp.ne.s32.totalorder %s168, %s169
      %p178 = scmp.eq.s32.totalorder %s45, 0
      %p179 = por %p177, %p178
      %p180 = scmp.ne.s32.totalorder %s168, %s169
      %p181 = scmp.eq.s32.totalorder %s46, 1
      %p182 = por %p180, %p181
      %p184 = scmp.ne.s32.totalorder %s169, %s183
      %p185 = scmp.eq.s32.totalorder %s46, 0
      %p186 = por %p184, %p185
      %s188 = sadd.s32 %s187, 1
      %p191 = scmp.eq.s32.totalorder %s40, 1
      %p192 = scmp.ne.s32.totalorder %s187, %s189
      %p193 = scmp.eq.s32.totalorder %s40, 0
      %p194 = por %p192, %p193
      %p195 = scmp.ne.s32.totalorder %s187, %s189
      %p196 = scmp.eq.s32.totalorder %s45, 1
      %p197 = por %p195, %p196
      %p198 = scmp.ne.s32.totalorder %s189, %s190
      %p199 = scmp.eq.s32.totalorder %s45, 0
      %p200 = por %p198, %p199
      %p201 = scmp.ne.s32.totalorder %s189, %s190
      %p202 = scmp.eq.s32.totalorder %s46, 1
      %p203 = por %p201, %p202
      %p205 = scmp.ne.s32.totalorder %s190, %s204
      %p206 = scmp.eq.s32.totalorder %s46, 0
      %p207 = por %p205, %p206
      %s209 = sadd.s32 %s208, 1
      %p212 = scmp.eq.s32.totalorder %s40, 1
      %p213 = scmp.ne.s32.totalorder %s208, %s210
      %p214 = scmp.eq.s32.totalorder %s40, 0
      %p215 = por %p213, %p214
      %p216 = scmp.ne.s32.totalorder %s208, %s210
      %p217 = scmp.eq.s32.totalorder %s45, 1
      %p218 = por %p216, %p217
      %p219 = scmp.ne.s32.totalorder %s210, %s211
      %p220 = scmp.eq.s32.totalorder %s45, 0
      %p221 = por %p219, %p220
      %p222 = scmp.ne.s32.totalorder %s210, %s211
      %p223 = scmp.eq.s32.totalorder %s46, 1
      %p224 = por %p222, %p223
      %p226 = scmp.ne.s32.totalorder %s211, %s225
      %p227 = scmp.eq.s32.totalorder %s46, 0
      %p228 = por %p226, %p227
      %s230 = sadd.s32 %s229, 1
      %p233 = scmp.eq.s32.totalorder %s40, 1
      %p234 = scmp.ne.s32.totalorder %s229, %s231
      %p235 = scmp.eq.s32.totalorder %s40, 0
      %p236 = por %p234, %p235
      %p237 = scmp.ne.s32.totalorder %s229, %s231
      %p238 = scmp.eq.s32.totalorder %s45, 1
      %p239 = por %p237, %p238
      %p240 = scmp.ne.s32.totalorder %s231, %s232
      %p241 = scmp.eq.s32.totalorder %s45, 0
      %p242 = por %p240, %p241
      %p243 = scmp.ne.s32.totalorder %s231, %s232
      %p244 = scmp.eq.s32.totalorder %s46, 1
      %p245 = por %p243, %p244
      %p247 = scmp.ne.s32.totalorder %s232, %s246
      %p248 = scmp.eq.s32.totalorder %s46, 0
      %p249 = por %p247, %p248
      %s251 = sadd.s32 %s250, 1
      %p254 = scmp.eq.s32.totalorder %s40, 1
      %p255 = scmp.ne.s32.totalorder %s250, %s252
      %p256 = scmp.eq.s32.totalorder %s40, 0
      %p257 = por %p255, %p256
      %p258 = scmp.ne.s32.totalorder %s250, %s252
      %p259 = scmp.eq.s32.totalorder %s45, 1
      %p260 = por %p258, %p259
      %p261 = scmp.ne.s32.totalorder %s252, %s253
      %p262 = scmp.eq.s32.totalorder %s45, 0
      %p263 = por %p261, %p262
      %p264 = scmp.ne.s32.totalorder %s252, %s253
      %p265 = scmp.eq.s32.totalorder %s46, 1
      %p266 = por %p264, %p265
      %p268 = scmp.ne.s32.totalorder %s253, %s267
      %p269 = scmp.eq.s32.totalorder %s46, 0
      %p270 = por %p268, %p269
      %s272 = sadd.s32 %s271, 1
      %p275 = scmp.eq.s32.totalorder %s40, 1
      %p276 = scmp.ne.s32.totalorder %s271, %s273
      %p277 = scmp.eq.s32.totalorder %s40, 0
      %p278 = por %p276, %p277
      %p279 = scmp.ne.s32.totalorder %s271, %s273
      %p280 = scmp.eq.s32.totalorder %s45, 1
      %p281 = por %p279, %p280
      %p282 = scmp.ne.s32.totalorder %s273, %s274
      %p283 = scmp.eq.s32.totalorder %s45, 0
      %p284 = por %p282, %p283
      %p285 = scmp.ne.s32.totalorder %s273, %s274
      %p286 = scmp.eq.s32.totalorder %s46, 1
      %p287 = por %p285, %p286
      %p289 = scmp.ne.s32.totalorder %s274, %s288
      %p290 = scmp.eq.s32.totalorder %s46, 0
      %p291 = por %p289, %p290
      %s293 = sadd.s32 %s292, 1
      %p296 = scmp.eq.s32.totalorder %s40, 1
      %p297 = scmp.ne.s32.totalorder %s292, %s294
      %p298 = scmp.eq.s32.totalorder %s40, 0
      %p299 = por %p297, %p298
      %p300 = scmp.ne.s32.totalorder %s292, %s294
      %p301 = scmp.eq.s32.totalorder %s45, 1
      %p302 = por %p300, %p301
      %p303 = scmp.ne.s32.totalorder %s294, %s295
      %p304 = scmp.eq.s32.totalorder %s45, 0
      %p305 = por %p303, %p304
      %p306 = scmp.ne.s32.totalorder %s294, %s295
      %p307 = scmp.eq.s32.totalorder %s46, 1
      %p308 = por %p306, %p307
      %p310 = scmp.ne.s32.totalorder %s295, %s309
      %p311 = scmp.eq.s32.totalorder %s46, 0
      %p312 = por %p310, %p311
      %s314 = sadd.s32 %s313, 1
      %p317 = scmp.eq.s32.totalorder %s40, 1
      %p318 = scmp.ne.s32.totalorder %s313, %s315
      %p319 = scmp.eq.s32.totalorder %s40, 0
      %p320 = por %p318, %p319
      %p321 = scmp.ne.s32.totalorder %s313, %s315
      %p322 = scmp.eq.s32.totalorder %s45, 1
      %p323 = por %p321, %p322
      %p324 = scmp.ne.s32.totalorder %s315, %s316
      %p325 = scmp.eq.s32.totalorder %s45, 0
      %p326 = por %p324, %p325
      %p327 = scmp.ne.s32.totalorder %s315, %s316
      %p328 = scmp.eq.s32.totalorder %s46, 1
      %p329 = por %p327, %p328
      %p331 = scmp.ne.s32.totalorder %s316, %s330
      %p332 = scmp.eq.s32.totalorder %s46, 0
      %p333 = por %p331, %p332
      %s335 = sadd.s32 %s334, 1
      %p338 = scmp.eq.s32.totalorder %s40, 1
      %p339 = scmp.ne.s32.totalorder %s334, %s336
      %p340 = scmp.eq.s32.totalorder %s40, 0
      %p341 = por %p339, %p340
      %p342 = scmp.ne.s32.totalorder %s334, %s336
      %p343 = scmp.eq.s32.totalorder %s45, 1
      %p344 = por %p342, %p343
      %p345 = scmp.ne.s32.totalorder %s336, %s337
      %p346 = scmp.eq.s32.totalorder %s45, 0
      %p347 = por %p345, %p346
      %p348 = scmp.ne.s32.totalorder %s336, %s337
      %p349 = scmp.eq.s32.totalorder %s46, 1
      %p350 = por %p348, %p349
      %p352 = scmp.ne.s32.totalorder %s337, %s351
      %p353 = scmp.eq.s32.totalorder %s46, 0
      %p354 = por %p352, %p353
      %s356 = sadd.s32 %s355, 1
      %p359 = scmp.eq.s32.totalorder %s40, 1
      %p360 = scmp.ne.s32.totalorder %s355, %s357
      %p361 = scmp.eq.s32.totalorder %s40, 0
      %p362 = por %p360, %p361
      %p363 = scmp.ne.s32.totalorder %s355, %s357
      %p364 = scmp.eq.s32.totalorder %s45, 1
      %p365 = por %p363, %p364
      %p366 = scmp.ne.s32.totalorder %s357, %s358
      %p367 = scmp.eq.s32.totalorder %s45, 0
      %p368 = por %p366, %p367
      %p369 = scmp.ne.s32.totalorder %s357, %s358
      %p370 = scmp.eq.s32.totalorder %s46, 1
      %p371 = por %p369, %p370
      %p373 = scmp.ne.s32.totalorder %s358, %s372
      %p374 = scmp.eq.s32.totalorder %s46, 0
      %p375 = por %p373, %p374
      %s377 = sadd.s32 %s376, 1
      %p380 = scmp.eq.s32.totalorder %s40, 1
      %p381 = scmp.ne.s32.totalorder %s376, %s378
      %p382 = scmp.eq.s32.totalorder %s40, 0
      %p383 = por %p381, %p382
      %p384 = scmp.ne.s32.totalorder %s376, %s378
      %p385 = scmp.eq.s32.totalorder %s45, 1
      %p386 = por %p384, %p385
      %p387 = scmp.ne.s32.totalorder %s378, %s379
      %p388 = scmp.eq.s32.totalorder %s45, 0
      %p389 = por %p387, %p388
      %p390 = scmp.ne.s32.totalorder %s378, %s379
      %p391 = scmp.eq.s32.totalorder %s46, 1
      %p392 = por %p390, %p391
      %p394 = scmp.ne.s32.totalorder %s379, %s393
      %p395 = scmp.eq.s32.totalorder %s46, 0
      %p396 = por %p394, %p395
      %s398 = sadd.s32 %s397, 1
      %p401 = scmp.eq.s32.totalorder %s40, 1
      %p402 = scmp.ne.s32.totalorder %s397, %s399
      %p403 = scmp.eq.s32.totalorder %s40, 0
      %p404 = por %p402, %p403
      %p405 = scmp.ne.s32.totalorder %s397, %s399
      %p406 = scmp.eq.s32.totalorder %s45, 1
      %p407 = por %p405, %p406
      %p408 = scmp.ne.s32.totalorder %s399, %s400
      %p409 = scmp.eq.s32.totalorder %s45, 0
      %p410 = por %p408, %p409
      %p411 = scmp.ne.s32.totalorder %s399, %s400
      %p412 = scmp.eq.s32.totalorder %s46, 1
      %p413 = por %p411, %p412
      %p415 = scmp.ne.s32.totalorder %s400, %s414
      %p416 = scmp.eq.s32.totalorder %s46, 0
      %p417 = por %p415, %p416
      %s419 = sadd.s32 %s418, 1
      %p422 = scmp.eq.s32.totalorder %s40, 1
      %p423 = scmp.ne.s32.totalorder %s418, %s420
      %p424 = scmp.eq.s32.totalorder %s40, 0
      %p425 = por %p423, %p424
      %p426 = scmp.ne.s32.totalorder %s418, %s420
      %p427 = scmp.eq.s32.totalorder %s45, 1
      %p428 = por %p426, %p427
      %p429 = scmp.ne.s32.totalorder %s420, %s421
      %p430 = scmp.eq.s32.totalorder %s45, 0
      %p431 = por %p429, %p430
      %p432 = scmp.ne.s32.totalorder %s420, %s421
      %p433 = scmp.eq.s32.totalorder %s46, 1
      %p434 = por %p432, %p433
      %p436 = scmp.ne.s32.totalorder %s421, %s435
      %p437 = scmp.eq.s32.totalorder %s46, 0
      %p438 = por %p436, %p437
      %s440 = sadd.s32 %s439, 1
      %p443 = scmp.eq.s32.totalorder %s40, 1
      %p444 = scmp.ne.s32.totalorder %s439, %s441
      %p445 = scmp.eq.s32.totalorder %s40, 0
      %p446 = por %p444, %p445
      %p447 = scmp.ne.s32.totalorder %s439, %s441
      %p448 = scmp.eq.s32.totalorder %s45, 1
      %p449 = por %p447, %p448
      %p450 = scmp.ne.s32.totalorder %s441, %s442
      %p451 = scmp.eq.s32.totalorder %s45, 0
      %p452 = por %p450, %p451
      %p453 = scmp.ne.s32.totalorder %s441, %s442
      %p454 = scmp.eq.s32.totalorder %s46, 1
      %p455 = por %p453, %p454
      %p457 = scmp.ne.s32.totalorder %s442, %s456
      %p458 = scmp.eq.s32.totalorder %s46, 0
      %p459 = por %p457, %p458
      %s461 = sadd.s32 %s460, 1
      %p464 = scmp.eq.s32.totalorder %s40, 1
      %p465 = scmp.ne.s32.totalorder %s460, %s462
      %p466 = scmp.eq.s32.totalorder %s40, 0
      %p467 = por %p465, %p466
      %p468 = scmp.ne.s32.totalorder %s460, %s462
      %p469 = scmp.eq.s32.totalorder %s45, 1
      %p470 = por %p468, %p469
      %p471 = scmp.ne.s32.totalorder %s462, %s463
      %p472 = scmp.eq.s32.totalorder %s45, 0
      %p473 = por %p471, %p472
      %p474 = scmp.ne.s32.totalorder %s462, %s463
      %p475 = scmp.eq.s32.totalorder %s46, 1
      %p476 = por %p474, %p475
      %p478 = scmp.ne.s32.totalorder %s463, %s477
      %p479 = scmp.eq.s32.totalorder %s46, 0
      %p480 = por %p478, %p479
      %s482 = sadd.s32 %s481, 1
      %p485 = scmp.eq.s32.totalorder %s40, 1
      %p486 = scmp.ne.s32.totalorder %s481, %s483
      %p487 = scmp.eq.s32.totalorder %s40, 0
      %p488 = por %p486, %p487
      %p489 = scmp.ne.s32.totalorder %s481, %s483
      %p490 = scmp.eq.s32.totalorder %s45, 1
      %p491 = por %p489, %p490
      %p492 = scmp.ne.s32.totalorder %s483, %s484
      %p493 = scmp.eq.s32.totalorder %s45, 0
      %p494 = por %p492, %p493
      %p495 = scmp.ne.s32.totalorder %s483, %s484
      %p496 = scmp.eq.s32.totalorder %s46, 1
      %p497 = por %p495, %p496
      %p499 = scmp.ne.s32.totalorder %s484, %s498
      %p500 = scmp.eq.s32.totalorder %s46, 0
      %p501 = por %p499, %p500
      %s503 = sadd.s32 %s502, 1
      %p506 = scmp.eq.s32.totalorder %s40, 1
      %p507 = scmp.ne.s32.totalorder %s502, %s504
      %p508 = scmp.eq.s32.totalorder %s40, 0
      %p509 = por %p507, %p508
      %p510 = scmp.ne.s32.totalorder %s502, %s504
      %p511 = scmp.eq.s32.totalorder %s45, 1
      %p512 = por %p510, %p511
      %p513 = scmp.ne.s32.totalorder %s504, %s505
      %p514 = scmp.eq.s32.totalorder %s45, 0
      %p515 = por %p513, %p514
      %p516 = scmp.ne.s32.totalorder %s504, %s505
      %p517 = scmp.eq.s32.totalorder %s46, 1
      %p518 = por %p516, %p517
      %p520 = scmp.ne.s32.totalorder %s505, %s519
      %p521 = scmp.eq.s32.totalorder %s46, 0
      %p522 = por %p520, %p521
      %s524 = sadd.s32 %s523, 1
      %p527 = scmp.eq.s32.totalorder %s40, 1
      %p528 = scmp.ne.s32.totalorder %s523, %s525
      %p529 = scmp.eq.s32.totalorder %s40, 0
      %p530 = por %p528, %p529
      %p531 = scmp.ne.s32.totalorder %s523, %s525
      %p532 = scmp.eq.s32.totalorder %s45, 1
      %p533 = por %p531, %p532
      %p534 = scmp.ne.s32.totalorder %s525, %s526
      %p535 = scmp.eq.s32.totalorder %s45, 0
      %p536 = por %p534, %p535
      %p537 = scmp.ne.s32.totalorder %s525, %s526
      %p538 = scmp.eq.s32.totalorder %s46, 1
      %p539 = por %p537, %p538
      %p541 = scmp.ne.s32.totalorder %s526, %s540
      %p542 = scmp.eq.s32.totalorder %s46, 0
      %p543 = por %p541, %p542
      %s545 = sadd.s32 %s544, 1
      %p548 = scmp.eq.s32.totalorder %s40, 1
      %p549 = scmp.ne.s32.totalorder %s544, %s546
      %p550 = scmp.eq.s32.totalorder %s40, 0
      %p551 = por %p549, %p550
      %p552 = scmp.ne.s32.totalorder %s544, %s546
      %p553 = scmp.eq.s32.totalorder %s45, 1
      %p554 = por %p552, %p553
      %p555 = scmp.ne.s32.totalorder %s546, %s547
      %p556 = scmp.eq.s32.totalorder %s45, 0
      %p557 = por %p555, %p556
      %p558 = scmp.ne.s32.totalorder %s546, %s547
      %p559 = scmp.eq.s32.totalorder %s46, 1
      %p560 = por %p558, %p559
      %p562 = scmp.ne.s32.totalorder %s547, %s561
      %p563 = scmp.eq.s32.totalorder %s46, 0
      %p564 = por %p562, %p563
      %s566 = sadd.s32 %s565, 1
      %p569 = scmp.eq.s32.totalorder %s40, 1
      %p570 = scmp.ne.s32.totalorder %s565, %s567
      %p571 = scmp.eq.s32.totalorder %s40, 0
      %p572 = por %p570, %p571
      %p573 = scmp.ne.s32.totalorder %s565, %s567
      %p574 = scmp.eq.s32.totalorder %s45, 1
      %p575 = por %p573, %p574
      %p576 = scmp.ne.s32.totalorder %s567, %s568
      %p577 = scmp.eq.s32.totalorder %s45, 0
      %p578 = por %p576, %p577
      %p579 = scmp.ne.s32.totalorder %s567, %s568
      %p580 = scmp.eq.s32.totalorder %s46, 1
      %p581 = por %p579, %p580
      %p583 = scmp.ne.s32.totalorder %s568, %s582
      %p584 = scmp.eq.s32.totalorder %s46, 0
      %p585 = por %p583, %p584
      %s587 = sadd.s32 %s586, 1
      %p590 = scmp.eq.s32.totalorder %s40, 1
      %p591 = scmp.ne.s32.totalorder %s586, %s588
      %p592 = scmp.eq.s32.totalorder %s40, 0
      %p593 = por %p591, %p592
      %p594 = scmp.ne.s32.totalorder %s586, %s588
      %p595 = scmp.eq.s32.totalorder %s45, 1
      %p596 = por %p594, %p595
      %p597 = scmp.ne.s32.totalorder %s588, %s589
      %p598 = scmp.eq.s32.totalorder %s45, 0
      %p599 = por %p597, %p598
      %p600 = scmp.ne.s32.totalorder %s588, %s589
      %p601 = scmp.eq.s32.totalorder %s46, 1
      %p602 = por %p600, %p601
      %p604 = scmp.ne.s32.totalorder %s589, %s603
      %p605 = scmp.eq.s32.totalorder %s46, 0
      %p606 = por %p604, %p605
      %s608 = sadd.s32 %s607, 1
      %p611 = scmp.eq.s32.totalorder %s40, 1
      %p612 = scmp.ne.s32.totalorder %s607, %s609
      %p613 = scmp.eq.s32.totalorder %s40, 0
      %p614 = por %p612, %p613
      %p615 = scmp.ne.s32.totalorder %s607, %s609
      %p616 = scmp.eq.s32.totalorder %s45, 1
      %p617 = por %p615, %p616
      %p618 = scmp.ne.s32.totalorder %s609, %s610
      %p619 = scmp.eq.s32.totalorder %s45, 0
      %p620 = por %p618, %p619
      %p621 = scmp.ne.s32.totalorder %s609, %s610
      %p622 = scmp.eq.s32.totalorder %s46, 1
      %p623 = por %p621, %p622
      %p625 = scmp.ne.s32.totalorder %s610, %s624
      %p626 = scmp.eq.s32.totalorder %s46, 0
      %p627 = por %p625, %p626
      %s628 = ssub.s32 %s47, %s59
      %s629 = ssub.s32 %s48, %s55
      %s630 = sor.u32 %s628, %s629
      %p631 = scmp.eq.s32.totalorder %s630, 0
      %s633 = sadd.s32 %s632, 1
      %s634 = scalar_select %p631, %s632, %s633
      %p637 = pneg %p631
      %p638 = scmp.eq.s32.totalorder %s40, 1
      %p639 = por %p637, %p638
      %p640 = scmp.ne.s32.totalorder %s632, %s635
      %p641 = scmp.eq.s32.totalorder %s40, 0
      %p642 = por %p640, %p641
      %p643 = scmp.ne.s32.totalorder %s632, %s635
      %p644 = scmp.eq.s32.totalorder %s45, 1
      %p645 = por %p643, %p644
      %p646 = scmp.ne.s32.totalorder %s635, %s636
      %p647 = scmp.eq.s32.totalorder %s45, 0
      %p648 = por %p646, %p647
      %p649 = scmp.ne.s32.totalorder %s635, %s636
      %p650 = scmp.eq.s32.totalorder %s46, 1
      %p651 = por %p649, %p650
      %p653 = scmp.ne.s32.totalorder %s636, %s652
      %p654 = scmp.eq.s32.totalorder %s46, 0
      %p655 = por %p653, %p654
      %p656 = scmp.le.s32.totalorder 1, %s40
      %p657 = scmp.lt.s32.totalorder %s40, 3
      %p658 = pnand %p656, %p657
      %p659 = pneg %p658
      // Predicated region
      $region9: #{tpu_custom_call.1} parent=5 // pred_check
        _
      $region10: #{tpu_custom_call.1} parent=5 // pred_check_branch
        %661 = sbr.rel (%p658) target = $region12
      $region11: #{tpu_custom_call.1} parent=5 // pred_region
        %s662 = ssub.s32 %s40, 1
        // Predicated region
        $region13: #{tpu_custom_call.1} parent=11 // pred_check
          %p663 = pneg %p179
        $region14: #{tpu_custom_call.1} parent=11 // pred_check_branch
          %665 = sbr.rel (%p663) target = $region16
        $region15: #{tpu_custom_call.1} parent=11 // pred_region
          _
        $region16: #{tpu_custom_call.1} parent=11 // pred_fallthru
          _
        // Predicated region
        $region17: #{tpu_custom_call.1} parent=11 // pred_check
          %p666 = pneg %p200
        $region18: #{tpu_custom_call.1} parent=11 // pred_check_branch
          %668 = sbr.rel (%p666) target = $region20
        $region19: #{tpu_custom_call.1} parent=11 // pred_region
          _
        $region20: #{tpu_custom_call.1} parent=11 // pred_fallthru
          _
        // Predicated region
        $region21: #{tpu_custom_call.1} parent=11 // pred_check
          %p669 = pneg %p221
        $region22: #{tpu_custom_call.1} parent=11 // pred_check_branch
          %671 = sbr.rel (%p669) target = $region24
        $region23: #{tpu_custom_call.1} parent=11 // pred_region
          _
        $region24: #{tpu_custom_call.1} parent=11 // pred_fallthru
          _
        // Predicated region
        $region25: #{tpu_custom_call.1} parent=11 // pred_check
          %p672 = pneg %p242
        $region26: #{tpu_custom_call.1} parent=11 // pred_check_branch
          %674 = sbr.rel (%p672) target = $region28
        $region27: #{tpu_custom_call.1} parent=11 // pred_region
          _
        $region28: #{tpu_custom_call.1} parent=11 // pred_fallthru
          _
        // Predicated region
        $region29: #{tpu_custom_call.1} parent=11 // pred_check
          %p675 = pneg %p263
        $region30: #{tpu_custom_call.1} parent=11 // pred_check_branch
          %677 = sbr.rel (%p675) target = $region32
        $region31: #{tpu_custom_call.1} parent=11 // pred_region
          _
        $region32: #{tpu_custom_call.1} parent=11 // pred_fallthru
          _
        // Predicated region
        $region33: #{tpu_custom_call.1} parent=11 // pred_check
          %p678 = pneg %p284
        $region34: #{tpu_custom_call.1} parent=11 // pred_check_branch
          %680 = sbr.rel (%p678) target = $region36
        $region35: #{tpu_custom_call.1} parent=11 // pred_region
          _
        $region36: #{tpu_custom_call.1} parent=11 // pred_fallthru
          _
        // Predicated region
        $region37: #{tpu_custom_call.1} parent=11 // pred_check
          %p681 = pneg %p305
        $region38: #{tpu_custom_call.1} parent=11 // pred_check_branch
          %683 = sbr.rel (%p681) target = $region40
        $region39: #{tpu_custom_call.1} parent=11 // pred_region
          _
        $region40: #{tpu_custom_call.1} parent=11 // pred_fallthru
          _
        // Predicated region
        $region41: #{tpu_custom_call.1} parent=11 // pred_check
          %p684 = pneg %p326
        $region42: #{tpu_custom_call.1} parent=11 // pred_check_branch
          %686 = sbr.rel (%p684) target = $region44
        $region43: #{tpu_custom_call.1} parent=11 // pred_region
          _
        $region44: #{tpu_custom_call.1} parent=11 // pred_fallthru
          _
        // Predicated region
        $region45: #{tpu_custom_call.1} parent=11 // pred_check
          %p687 = pneg %p347
        $region46: #{tpu_custom_call.1} parent=11 // pred_check_branch
          %689 = sbr.rel (%p687) target = $region48
        $region47: #{tpu_custom_call.1} parent=11 // pred_region
          _
        $region48: #{tpu_custom_call.1} parent=11 // pred_fallthru
          _
        // Predicated region
        $region49: #{tpu_custom_call.1} parent=11 // pred_check
          %p690 = pneg %p368
        $region50: #{tpu_custom_call.1} parent=11 // pred_check_branch
          %692 = sbr.rel (%p690) target = $region52
        $region51: #{tpu_custom_call.1} parent=11 // pred_region
          _
        $region52: #{tpu_custom_call.1} parent=11 // pred_fallthru
          _
        // Predicated region
        $region53: #{tpu_custom_call.1} parent=11 // pred_check
          %p693 = pneg %p389
        $region54: #{tpu_custom_call.1} parent=11 // pred_check_branch
          %695 = sbr.rel (%p693) target = $region56
        $region55: #{tpu_custom_call.1} parent=11 // pred_region
          %697 = vsyncadd [#allocation6], 0
          %s698 = sshll.u32 %s14, 4
          %s699 = int_to_ptr.hbm [resolvable:$true] %s698
          %s700 = sshll.u32 [#allocation5], 4
          %s701 = int_to_ptr.vmem [resolvable:$true] %s700
          %706 = dma.hbm_to_vmem [thread:$0]  %s699, 512, %s701, [#allocation6], 128, 128, 8
        $region56: #{tpu_custom_call.1} parent=11 // pred_fallthru
          _
        // Predicated region
        $region57: #{tpu_custom_call.1} parent=11 // pred_check
          %p707 = pneg %p410
        $region58: #{tpu_custom_call.1} parent=11 // pred_check_branch
          %709 = sbr.rel (%p707) target = $region60
        $region59: #{tpu_custom_call.1} parent=11 // pred_region
          _
        $region60: #{tpu_custom_call.1} parent=11 // pred_fallthru
          _
        // Predicated region
        $region61: #{tpu_custom_call.1} parent=11 // pred_check
          %p710 = pneg %p431
        $region62: #{tpu_custom_call.1} parent=11 // pred_check_branch
          %712 = sbr.rel (%p710) target = $region64
        $region63: #{tpu_custom_call.1} parent=11 // pred_region
          %714 = vsyncadd [#allocation6], 0
          %s715 = sshll.u32 %s16, 4
          %s716 = int_to_ptr.hbm [resolvable:$true] %s715
          %s717 = sshll.u32 [#allocation7], 4
          %s718 = int_to_ptr.vmem [resolvable:$true] %s717
          %723 = dma.hbm_to_vmem [thread:$0]  %s716, 512, %s718, [#allocation6], 128, 128, 8
        $region64: #{tpu_custom_call.1} parent=11 // pred_fallthru
          _
        // Predicated region
        $region65: #{tpu_custom_call.1} parent=11 // pred_check
          %p724 = pneg %p452
        $region66: #{tpu_custom_call.1} parent=11 // pred_check_branch
          %726 = sbr.rel (%p724) target = $region68
        $region67: #{tpu_custom_call.1} parent=11 // pred_region
          _
        $region68: #{tpu_custom_call.1} parent=11 // pred_fallthru
          _
        // Predicated region
        $region69: #{tpu_custom_call.1} parent=11 // pred_check
          %p727 = pneg %p473
        $region70: #{tpu_custom_call.1} parent=11 // pred_check_branch
          %729 = sbr.rel (%p727) target = $region72
        $region71: #{tpu_custom_call.1} parent=11 // pred_region
          _
        $region72: #{tpu_custom_call.1} parent=11 // pred_fallthru
          _
        // Predicated region
        $region73: #{tpu_custom_call.1} parent=11 // pred_check
          %p730 = pneg %p494
        $region74: #{tpu_custom_call.1} parent=11 // pred_check_branch
          %732 = sbr.rel (%p730) target = $region76
        $region75: #{tpu_custom_call.1} parent=11 // pred_region
          _
        $region76: #{tpu_custom_call.1} parent=11 // pred_fallthru
          _
        // Predicated region
        $region77: #{tpu_custom_call.1} parent=11 // pred_check
          %p733 = pneg %p515
        $region78: #{tpu_custom_call.1} parent=11 // pred_check_branch
          %735 = sbr.rel (%p733) target = $region80
        $region79: #{tpu_custom_call.1} parent=11 // pred_region
          %737 = vsyncadd [#allocation9], 0
          %s738 = sshll.u32 %s20, 4
          %s739 = int_to_ptr.hbm [resolvable:$true] %s738
          %s740 = sshll.u32 [#allocation8], 4
          %s741 = int_to_ptr.vmem [resolvable:$true] %s740
          %746 = dma.hbm_to_vmem [thread:$0]  %s739, 512, %s741, [#allocation9], 128, 128, 8
        $region80: #{tpu_custom_call.1} parent=11 // pred_fallthru
          _
        // Predicated region
        $region81: #{tpu_custom_call.1} parent=11 // pred_check
          %p747 = pneg %p536
        $region82: #{tpu_custom_call.1} parent=11 // pred_check_branch
          %749 = sbr.rel (%p747) target = $region84
        $region83: #{tpu_custom_call.1} parent=11 // pred_region
          _
        $region84: #{tpu_custom_call.1} parent=11 // pred_fallthru
          _
        // Predicated region
        $region85: #{tpu_custom_call.1} parent=11 // pred_check
          %p750 = pneg %p557
        $region86: #{tpu_custom_call.1} parent=11 // pred_check_branch
          %752 = sbr.rel (%p750) target = $region88
        $region87: #{tpu_custom_call.1} parent=11 // pred_region
          _
        $region88: #{tpu_custom_call.1} parent=11 // pred_fallthru
          _
        // Predicated region
        $region89: #{tpu_custom_call.1} parent=11 // pred_check
          %p753 = pneg %p578
        $region90: #{tpu_custom_call.1} parent=11 // pred_check_branch
          %755 = sbr.rel (%p753) target = $region92
        $region91: #{tpu_custom_call.1} parent=11 // pred_region
          _
        $region92: #{tpu_custom_call.1} parent=11 // pred_fallthru
          _
        // Predicated region
        $region93: #{tpu_custom_call.1} parent=11 // pred_check
          %p756 = pneg %p599
        $region94: #{tpu_custom_call.1} parent=11 // pred_check_branch
          %758 = sbr.rel (%p756) target = $region96
        $region95: #{tpu_custom_call.1} parent=11 // pred_region
          _
        $region96: #{tpu_custom_call.1} parent=11 // pred_fallthru
          _
        // Predicated region
        $region97: #{tpu_custom_call.1} parent=11 // pred_check
          %p759 = pneg %p620
        $region98: #{tpu_custom_call.1} parent=11 // pred_check_branch
          %761 = sbr.rel (%p759) target = $region100
        $region99: #{tpu_custom_call.1} parent=11 // pred_region
          _
        $region100: #{tpu_custom_call.1} parent=11 // pred_fallthru
          _
      $region12: #{tpu_custom_call.1} parent=5 // pred_fallthru
        _
      %p762 = scmp.lt.s32.totalorder %s40, 2
      // Predicated region
      $region101: #{tpu_custom_call.1} parent=5 // pred_check
        %p763 = pneg %p762
      $region102: #{tpu_custom_call.1} parent=5 // pred_check_branch
        %765 = sbr.rel (%p763) target = $region104
      $region103: #{tpu_custom_call.1} parent=5 // pred_region
        // Predicated region
        $region105: #{tpu_custom_call.1} parent=103 // pred_check
          %p766 = pneg %p72
        $region106: #{tpu_custom_call.1} parent=103 // pred_check_branch
          %768 = sbr.rel (%p766) target = $region108
        $region107: #{tpu_custom_call.1} parent=103 // pred_region
          %s769 = sand.u32 %s62, 1
          %s770 = scalar_lea.sflag [#allocation3], %s769
          %s771 = sand.u32 %s62, 1
          %s772 = smul.addr %s771, 8
          %s773 = scalar_lea.vmem [#allocation2], %s772
          %775 = vsyncadd %s770, 0
          %s776 = smul.addr %s47, 8
          %s777 = scalar_lea.hbm %s0, %s776
          %s779 = sshll.u32 %s777, 4
          %s780 = int_to_ptr.hbm [resolvable:$true] %s779
          %s781 = sshll.u32 %s773, 4
          %s782 = int_to_ptr.vmem [resolvable:$true] %s781
          %784 = dma.hbm_to_vmem [thread:$0]  %s780, 128, %s782, %s770
        $region108: #{tpu_custom_call.1} parent=103 // pred_fallthru
          _
        // Predicated region
        $region109: #{tpu_custom_call.1} parent=103 // pred_check
          %p785 = pneg %p98
        $region110: #{tpu_custom_call.1} parent=103 // pred_check_branch
          %787 = sbr.rel (%p785) target = $region112
        $region111: #{tpu_custom_call.1} parent=103 // pred_region
          %p788 = scmp.lt.s32.totalorder %s47, 1
          %s789 = scalar_select %p788, %s47, 1
          %s790 = smul.addr %s789, 2
          %s791 = smul.addr %s790, 8
          %s792 = scalar_lea.vmem %s1, %s791
        $region112: #{tpu_custom_call.1} parent=103 // pred_fallthru
          _
        // Predicated region
        $region113: #{tpu_custom_call.1} parent=103 // pred_check
          %p793 = pneg %p124
        $region114: #{tpu_custom_call.1} parent=103 // pred_check_branch
          %795 = sbr.rel (%p793) target = $region116
        $region115: #{tpu_custom_call.1} parent=103 // pred_region
          %p796 = scmp.lt.s32.totalorder %s47, 1
          %s797 = scalar_select %p796, %s47, 1
          %s798 = scalar_lea.vmem %s2, %s797
        $region116: #{tpu_custom_call.1} parent=103 // pred_fallthru
          _
        // Predicated region
        $region117: #{tpu_custom_call.1} parent=103 // pred_check
          %p799 = pneg %p152
        $region118: #{tpu_custom_call.1} parent=103 // pred_check_branch
          %801 = sbr.rel (%p799) target = $region120
        $region119: #{tpu_custom_call.1} parent=103 // pred_region
          %p802 = scmp.lt.s32.totalorder %s47, 1
          %s803 = scalar_select %p802, %s47, 1
          %p804 = scmp.lt.s32.totalorder %s48, 0
          %s805 = scalar_select %p804, %s48, 0
          %s806 = sadd.s32 %s805, %s803
          %s807 = smul.addr %s806, 8
          %s808 = scalar_lea.vmem %s3, %s807
        $region120: #{tpu_custom_call.1} parent=103 // pred_fallthru
          _
      $region104: #{tpu_custom_call.1} parent=5 // pred_fallthru
        _
      %p809 = scmp.le.s32.totalorder 1, %s40
      %p810 = scmp.lt.s32.totalorder %s40, 3
      %p811 = pnand %p809, %p810
      %p812 = pneg %p811
      // Predicated region
      $region121: #{tpu_custom_call.1} parent=5 // pred_check
        _
      $region122: #{tpu_custom_call.1} parent=5 // pred_check_branch
        %814 = sbr.rel (%p811) target = $region124
      $region123: #{tpu_custom_call.1} parent=5 // pred_region
        %s815 = ssub.s32 %s40, 1
        %s816 = sand.u32 %s65, 1
        %s817 = scalar_lea.sflag [#allocation3], %s816
        %s818 = sand.u32 %s65, 1
        %s819 = smul.addr %s818, 8
        %s820 = scalar_lea.vmem [#allocation2], %s819
        // Predicated region
        $region125: #{tpu_custom_call.1} parent=123 // pred_check
          %p821 = pneg %p78
        $region126: #{tpu_custom_call.1} parent=123 // pred_check_branch
          %823 = sbr.rel (%p821) target = $region128
        $region127: #{tpu_custom_call.1} parent=123 // pred_region
          %825 = dma.done %s817, 128
        $region128: #{tpu_custom_call.1} parent=123 // pred_fallthru
          _
        // Predicated region
        $region129: #{tpu_custom_call.1} parent=123 // pred_check
          %p826 = pneg %p389
        $region130: #{tpu_custom_call.1} parent=123 // pred_check_branch
          %828 = sbr.rel (%p826) target = $region132
        $region131: #{tpu_custom_call.1} parent=123 // pred_region
          %830 = dma.done [#allocation6], 512
        $region132: #{tpu_custom_call.1} parent=123 // pred_fallthru
          _
        // Predicated region
        $region133: #{tpu_custom_call.1} parent=123 // pred_check
          %p831 = pneg %p431
        $region134: #{tpu_custom_call.1} parent=123 // pred_check_branch
          %833 = sbr.rel (%p831) target = $region136
        $region135: #{tpu_custom_call.1} parent=123 // pred_region
          %835 = dma.done [#allocation6], 512
        $region136: #{tpu_custom_call.1} parent=123 // pred_fallthru
          _
        // Predicated region
        $region137: #{tpu_custom_call.1} parent=123 // pred_check
          %p836 = pneg %p515
        $region138: #{tpu_custom_call.1} parent=123 // pred_check_branch
          %838 = sbr.rel (%p836) target = $region140
        $region139: #{tpu_custom_call.1} parent=123 // pred_region
          %840 = dma.done [#allocation9], 512
        $region140: #{tpu_custom_call.1} parent=123 // pred_fallthru
          _
        %s841 = sand.u32 %s65, 1
        %s842 = scalar_lea.sflag [#allocation3], %s841
        %s843 = sand.u32 %s65, 1
        %s844 = smul.addr %s843, 8
        %s845 = scalar_lea.vmem [#allocation2], %s844
        %p846 = pneg %p78
        %p847 = pneg %p75
        %p848 = scmp.lt.s32.totalorder %s49, 1
        %s849 = scalar_select %p848, %s49, 1
        %s850 = smul.addr %s849, 2
        %s851 = smul.addr %s850, 8
        %s852 = scalar_lea.vmem %s1, %s851
        %p853 = pneg %p104
        %p854 = pneg %p101
        %p855 = scmp.lt.s32.totalorder %s49, 1
        %s856 = scalar_select %p855, %s49, 1
        %s857 = scalar_lea.vmem %s2, %s856
        %p858 = pneg %p130
        %p859 = pneg %p127
        %p860 = scmp.lt.s32.totalorder %s49, 1
        %s861 = scalar_select %p860, %s49, 1
        %p862 = scmp.lt.s32.totalorder %s50, 0
        %s863 = scalar_select %p862, %s50, 0
        %s864 = sadd.s32 %s863, %s861
        %s865 = smul.addr %s864, 8
        %s866 = scalar_lea.vmem %s3, %s865
        %p867 = pneg %p158
        %p868 = pneg %p155
        %p869 = pneg %p179
        %p870 = pneg %p176
        %p871 = pneg %p200
        %p872 = pneg %p197
        %p873 = pneg %p221
        %p874 = pneg %p218
        %p875 = pneg %p242
        %p876 = pneg %p239
        %p877 = pneg %p263
        %p878 = pneg %p260
        %p879 = pneg %p284
        %p880 = pneg %p281
        %p881 = pneg %p305
        %p882 = pneg %p302
        %p883 = pneg %p326
        %p884 = pneg %p323
        %p885 = pneg %p347
        %p886 = pneg %p344
        %p887 = pneg %p368
        %p888 = pneg %p365
        %p889 = pneg %p389
        %p890 = pneg %p386
        %p891 = pneg %p410
        %p892 = pneg %p407
        %p893 = pneg %p431
        %p894 = pneg %p428
        %p895 = pneg %p452
        %p896 = pneg %p449
        %p897 = pneg %p473
        %p898 = pneg %p470
        %p899 = pneg %p494
        %p900 = pneg %p491
        %p901 = pneg %p515
        %p902 = pneg %p512
        %p903 = pneg %p536
        %p904 = pneg %p533
        %p905 = pneg %p557
        %p906 = pneg %p554
        %p907 = pneg %p578
        %p908 = pneg %p575
        %p909 = pneg %p599
        %p910 = pneg %p596
        %p911 = pneg %p620
        %p912 = pneg %p617
        %p913 = pneg %p648
        %p914 = pneg %p645
        %s915 = sand.u32 %s635, 1
        %s916 = scalar_lea.sflag [#allocation4], %s915
        %s917 = sand.u32 %s635, 1
        %s918 = smul.addr %s917, 8
        %s919 = scalar_lea.vmem [#allocation10], %s918
        %p920 = scmp.lt.s32.totalorder %s49, 1
        %s921 = scalar_select %p920, %s49, 1
        %s922 = smul.addr %s921, 2
        %s923 = smul.addr %s922, 8
        %s924 = scalar_lea.vmem %s1, %s923
        %p925 = scmp.lt.s32.totalorder %s49, 1
        %s926 = scalar_select %p925, %s49, 1
        %s927 = scalar_lea.vmem %s2, %s926
        %p928 = scmp.lt.s32.totalorder %s49, 1
        %s929 = scalar_select %p928, %s49, 1
        %p930 = scmp.lt.s32.totalorder %s50, 0
        %s931 = scalar_select %p930, %s50, 0
        %s932 = sadd.s32 %s931, %s929
        %s933 = smul.addr %s932, 8
        %s934 = scalar_lea.vmem %s3, %s933
        %v935 = vld [vmem:[%s820] sm:$0xff]
        %s936 = smul.u32 %s50, 8
        %s937 = scalar_lea.vmem %s820, %s936 [#allocation2]
        %v938 = vld [vmem:[%s937] sm:$0xff]
        %v939 = vld [vmem:[%s934] sm:$0xff]
        %v940 = vld [vmem:[%s927] sm:$0x1]
        %v941 = vlaneseq
        %v942 = vshrl.u32 %v941, 7
        %v943 = vstv %s936
        %v944 = vadd.s32 %v942, %v943
        %v945 = vlaneseq
        %v946 = vand.u32 %v945, 127
        %vm947 = vcmp.gt.s32.totalorder %v946, %v944
        %v948 = vsel %vm947, -1e+09, 0.0
        %v950 = vperm.slane %v940, 0
        %v952 = vadd.f32 %v948, %v950
        %v953 = vld [vmem:[%s4] sm:$0xff]
        %v954 = vld [vmem:[%s4 + $0x8] sm:$0xff]
        %v955 = vld [vmem:[%s4 + $0x10] sm:$0xff]
        %v956 = vld [vmem:[%s4 + $0x18] sm:$0xff]
        %v957 = vld [vmem:[%s5] sm:$0x1]
        %v958 = vld [vmem:[%s6] sm:$0xff]
        %v959 = vld [vmem:[%s6 + $0x8] sm:$0xff]
        %v960 = vld [vmem:[%s6 + $0x10] sm:$0xff]
        %v961 = vld [vmem:[%s6 + $0x18] sm:$0xff]
        %v962 = vld [vmem:[%s7] sm:$0x1]
        %v963 = vld [vmem:[%s8] sm:$0xff]
        %v964 = vld [vmem:[%s8 + $0x8] sm:$0xff]
        %v965 = vld [vmem:[%s8 + $0x10] sm:$0xff]
        %v966 = vld [vmem:[%s8 + $0x18] sm:$0xff]
        %v968 = vperm.slane %v957, 0
        %vm970 = vcmask 261120
        %v972 = vsel %vm970, %v938, 0
        %974 = vmatpush.msra.mxu0 0.0
        %975 = vmatpush.msra.mxu0 0.0
        %976 = vmatpush.msra.mxu0 0.0
        %977 = vmatpush.msra.mxu0 0.0
        %978 = vmatpush.msra.mxu0 0.0
        %979 = vmatpush.msra.mxu0 0.0
        %980 = vmatpush.msra.mxu0 0.0
        %981 = vmatpush.msra.mxu0 0.0
        %982 = vmatpush.msra.mxu0 0.0
        %983 = vmatpush.msra.mxu0 0.0
        %984 = vmatpush.msra.mxu0 0.0
        %985 = vmatpush.msra.mxu0 0.0
        %986 = vmatpush.msra.mxu0 %v956
        %987 = vmatpush.msra.mxu0 %v955
        %988 = vmatpush.msra.mxu0 %v954
        %989 = vmatpush.msra.mxu0 %v953
        %990 = vmatmul.f32.gmra.mxu0 %v972
        %v991 = vpop.f32.mrf.mxu0
        %v992 = vadd.f32 %v968, %v991
        %993 = vdwg.mxu0
        %v995 = vperm.slane %v962, 0
        %v998 = vsel %vm970, %v935, 0
        %1000 = vmatpush.msra.mxu0 0.0
        %1001 = vmatpush.msra.mxu0 0.0
        %1002 = vmatpush.msra.mxu0 0.0
        %1003 = vmatpush.msra.mxu0 0.0
        %1004 = vmatpush.msra.mxu0 0.0
        %1005 = vmatpush.msra.mxu0 0.0
        %1006 = vmatpush.msra.mxu0 0.0
        %1007 = vmatpush.msra.mxu0 0.0
        %1008 = vmatpush.msra.mxu0 0.0
        %1009 = vmatpush.msra.mxu0 0.0
        %1010 = vmatpush.msra.mxu0 0.0
        %1011 = vmatpush.msra.mxu0 0.0
        %1012 = vmatpush.msra.mxu0 %v961
        %1013 = vmatpush.msra.mxu0 %v960
        %1014 = vmatpush.msra.mxu0 %v959
        %1015 = vmatpush.msra.mxu0 %v958
        %1016 = vmatmul.f32.gmra.mxu0 %v998
        %v1017 = vpop.f32.mrf.mxu0
        %v1018 = vadd.f32 %v995, %v1017
        %1019 = vdwg.mxu0
        %vm1020 = vcmask 130048
        %v1022 = vsel %vm1020, %v992, 0
        %v1025 = vsel %vm1020, %v1018, 0
        %1027 = vmatpush.xpose.msra.mxu0 0.0
        %1028 = vmatpush.xpose.msra.mxu0 0.0
        %1029 = vmatpush.xpose.msra.mxu0 0.0
        %1030 = vmatpush.xpose.msra.mxu0 0.0
        %1031 = vmatpush.xpose.msra.mxu0 0.0
        %1032 = vmatpush.xpose.msra.mxu0 0.0
        %1033 = vmatpush.xpose.msra.mxu0 0.0
        %1034 = vmatpush.xpose.msra.mxu0 0.0
        %1035 = vmatpush.xpose.msra.mxu0 0.0
        %1036 = vmatpush.xpose.msra.mxu0 0.0
        %1037 = vmatpush.xpose.msra.mxu0 0.0
        %1038 = vmatpush.xpose.msra.mxu0 0.0
        %1039 = vmatpush.xpose.msra.mxu0 0.0
        %1040 = vmatpush.xpose.msra.mxu0 0.0
        %1041 = vmatpush.xpose.msra.mxu0 0.0
        %1042 = vmatpush.xpose.msra.mxu0 %v1025
        %1043 = vmatmul.f32.gmra.mxu0 %v1022
        %v1044 = vpop.f32.mrf.mxu0
        %v1045 = vadd.f32 0.0, %v1044
        %1046 = vdwg.mxu0
        %v1047 = vmul.f32 %v1045, 0.25
        %v1048 = vadd.f32 %v1047, %v952
        %vm1049 = vcmask 64512
        %v1050 = vsel %vm1049, %v1048, -inf
        %1051 = vmax.xlane.f32.xlu0 %v1050
        %v1052 = vpop.xlane.xlu0 %1051
        %v1053 = vsub.f32 %v1048, %v1052
        %v1054 = vmul.f32 %v1053, 1.442695
        %v1055 = vpow.pop %v1054
        %v1056 = vsel %vm1049, %v1055, 0.0
        %1057 = vadd.xlane.f32.xlu0 %v1056
        %v1058 = vpop.xlane.xlu0 %1057
        %v1059 = vrcp.pop %v1058
        %v1060 = vmul.f32 %v1055, %v1059
        %1061 = vrot.lane.b32.xlu0 %v1018, 96
        %v1062 = vpop.permute.xlu0 %1061
        %v1065 = vsel %vm1049, %v1060, 0
        %1067 = vmatpush.msra.mxu0 0.0
        %1068 = vmatpush.msra.mxu0 0.0
        %1069 = vmatpush.msra.mxu0 0.0
        %1070 = vmatpush.msra.mxu0 0.0
        %1071 = vmatpush.msra.mxu0 0.0
        %1072 = vmatpush.msra.mxu0 0.0
        %1073 = vmatpush.msra.mxu0 0.0
        %1074 = vmatpush.msra.mxu0 0.0
        %1075 = vmatpush.msra.mxu0 0.0
        %1076 = vmatpush.msra.mxu0 0.0
        %1077 = vmatpush.msra.mxu0 0.0
        %1078 = vmatpush.msra.mxu0 0.0
        %1079 = vmatpush.msra.mxu0 0.0
        %1080 = vmatpush.msra.mxu0 0.0
        %1081 = vmatpush.msra.mxu0 0.0
        %1082 = vmatpush.msra.mxu0 %v1062
        %1083 = vmatmul.f32.gmra.mxu0 %v1065
        %v1084 = vpop.f32.mrf.mxu0
        %v1085 = vadd.f32 0.0, %v1084
        %1086 = vdwg.mxu0
        %1087 = vrot.lane.b32.xlu0 %v992, 112
        %v1088 = vpop.permute.xlu0 %1087
        %1089 = vrot.lane.b32.xlu0 %v1018, 112
        %v1090 = vpop.permute.xlu0 %1089
        %v1091 = vsel %vm1020, %v1088, 0
        %v1093 = vsel %vm1020, %v1090, 0
        %1095 = vmatpush.xpose.msra.mxu0 0.0
        %1096 = vmatpush.xpose.msra.mxu0 0.0
        %1097 = vmatpush.xpose.msra.mxu0 0.0
        %1098 = vmatpush.xpose.msra.mxu0 0.0
        %1099 = vmatpush.xpose.msra.mxu0 0.0
        %1100 = vmatpush.xpose.msra.mxu0 0.0
        %1101 = vmatpush.xpose.msra.mxu0 0.0
        %1102 = vmatpush.xpose.msra.mxu0 0.0
        %1103 = vmatpush.xpose.msra.mxu0 0.0
        %1104 = vmatpush.xpose.msra.mxu0 0.0
        %1105 = vmatpush.xpose.msra.mxu0 0.0
        %1106 = vmatpush.xpose.msra.mxu0 0.0
        %1107 = vmatpush.xpose.msra.mxu0 0.0
        %1108 = vmatpush.xpose.msra.mxu0 0.0
        %1109 = vmatpush.xpose.msra.mxu0 0.0
        %1110 = vmatpush.xpose.msra.mxu0 %v1093
        %1111 = vmatmul.f32.gmra.mxu0 %v1091
        %v1112 = vpop.f32.mrf.mxu0
        %v1113 = vadd.f32 0.0, %v1112
        %1114 = vdwg.mxu0
        %v1115 = vmul.f32 %v1113, 0.25
        %v1116 = vadd.f32 %v1115, %v952
        %v1117 = vsel %vm1049, %v1116, -inf
        %1118 = vmax.xlane.f32.xlu0 %v1117
        %v1119 = vpop.xlane.xlu0 %1118
        %v1120 = vsub.f32 %v1116, %v1119
        %v1121 = vmul.f32 %v1120, 1.442695
        %v1122 = vpow.pop %v1121
        %v1123 = vsel %vm1049, %v1122, 0.0
        %1124 = vadd.xlane.f32.xlu0 %v1123
        %v1125 = vpop.xlane.xlu0 %1124
        %v1126 = vrcp.pop %v1125
        %v1127 = vmul.f32 %v1122, %v1126
        %1128 = vrot.lane.b32.xlu0 %v1018, 80
        %v1129 = vpop.permute.xlu0 %1128
        %v1132 = vsel %vm1049, %v1127, 0
        %1134 = vmatpush.msra.mxu0 0.0
        %1135 = vmatpush.msra.mxu0 0.0
        %1136 = vmatpush.msra.mxu0 0.0
        %1137 = vmatpush.msra.mxu0 0.0
        %1138 = vmatpush.msra.mxu0 0.0
        %1139 = vmatpush.msra.mxu0 0.0
        %1140 = vmatpush.msra.mxu0 0.0
        %1141 = vmatpush.msra.mxu0 0.0
        %1142 = vmatpush.msra.mxu0 0.0
        %1143 = vmatpush.msra.mxu0 0.0
        %1144 = vmatpush.msra.mxu0 0.0
        %1145 = vmatpush.msra.mxu0 0.0
        %1146 = vmatpush.msra.mxu0 0.0
        %1147 = vmatpush.msra.mxu0 0.0
        %1148 = vmatpush.msra.mxu0 0.0
        %1149 = vmatpush.msra.mxu0 %v1129
        %1150 = vmatmul.f32.gmra.mxu0 %v1132
        %v1151 = vpop.f32.mrf.mxu0
        %v1152 = vadd.f32 0.0, %v1151
        %1153 = vdwg.mxu0
        %1155 = vrot.lane.b32.xlu0 %v1152, 16
        %v1156 = vpop.permute.xlu0 %1155
        %v1158 = vsel %vm1020, %v1085, %v1156
        %v1159 = vld [vmem:[%s9] sm:$0x1]
        %v1161 = vperm.slane %v1159, 0
        %v1164 = vsel %vm970, %v1158, 0
        %1166 = vmatpush.msra.mxu0 0.0
        %1167 = vmatpush.msra.mxu0 0.0
        %1168 = vmatpush.msra.mxu0 0.0
        %1169 = vmatpush.msra.mxu0 0.0
        %1170 = vmatpush.msra.mxu0 0.0
        %1171 = vmatpush.msra.mxu0 0.0
        %1172 = vmatpush.msra.mxu0 0.0
        %1173 = vmatpush.msra.mxu0 0.0
        %1174 = vmatpush.msra.mxu0 0.0
        %1175 = vmatpush.msra.mxu0 0.0
        %1176 = vmatpush.msra.mxu0 0.0
        %1177 = vmatpush.msra.mxu0 0.0
        %1178 = vmatpush.msra.mxu0 %v966
        %1179 = vmatpush.msra.mxu0 %v965
        %1180 = vmatpush.msra.mxu0 %v964
        %1181 = vmatpush.msra.mxu0 %v963
        %1182 = vmatmul.f32.gmra.mxu0 %v1164
        %v1183 = vpop.f32.mrf.mxu0
        %v1184 = vadd.f32 %v1161, %v1183
        %1185 = vdwg.mxu0
        %v1186 = vadd.f32 %v1184, %v938
        %v1187 = vld [vmem:[%s10] sm:$0x1]
        %v1188 = vld [vmem:[%s11] sm:$0x1]
        %v1189 = vsel %vm970, %v1186, 0.0
        %1190 = vadd.xlane.f32.xlu0 %v1189
        %v1191 = vpop.xlane.xlu0 %1190
        %v1192 = vrcp.pop 32.0
        %v1193 = vmul.f32 32.0, %v1192
        %v1194 = vsub.f32 1.0, %v1193
        %v1195 = vmul.f32 %v1192, %v1194
        %v1196 = vadd.f32 %v1192, %v1195
        %vm1197 = vweird.f32 %v1192
        %v1198 = vsel %vm1197, %v1192, %v1196
        %v1199 = vmul.f32 %v1191, %v1198
        %v1200 = vsub.f32 %v1186, %v1199
        %v1201 = vmul.f32 %v1200, %v1200
        %v1202 = vsel %vm970, %v1201, 0.0
        %1203 = vadd.xlane.f32.xlu0 %v1202
        %v1204 = vpop.xlane.xlu0 %1203
        %v1205 = vmul.f32 %v1204, %v1198
        %v1206 = vadd.f32 %v1205, 1e-05
        %v1207 = vrsqrt.pop %v1206
        %v1208 = vmul.f32 %v1207, %v1206
        %v1209 = vmul.f32 %v1208, %v1207
        %v1210 = vmul.f32 0.5, %v1209
        %v1211 = vsub.f32 1.5, %v1210
        %v1212 = vmul.f32 %v1207, %v1211
        %vm1213 = vweird.f32 %v1206
        %vm1214 = vweird.f32 %v1207
        %vm1215 = vmor %vm1213, %vm1214
        %v1216 = vsel %vm1215, %v1207, %v1212
        %v1217 = vmul.f32 %v1200, %v1216
        %v1219 = vperm.slane %v1187, 0
        %v1221 = vmul.f32 %v1217, %v1219
        %v1223 = vperm.slane %v1188, 0
        %v1225 = vadd.f32 %v1221, %v1223
        %1227 = vset.pattern.permute.xlu0 0
        %1228 = vperm.xlu0 %1227, %v939
        %v1229 = vpop.permute.xlu0 %1228
        %v1231 = vmul.f32 %v1225, %v1229
        %v1232 = vld [vmem:[%s924] sm:$0xff]
        %v1233 = vld [vmem:[%s924 + $0x8] sm:$0x3]
        %v1234 = vld [vmem:[%s12] sm:$0xff]
        %v1235 = vld [vmem:[%s12 + $0x8] sm:$0xff]
        %v1236 = vld [vmem:[%s12 + $0x10] sm:$0xff]
        %v1237 = vld [vmem:[%s12 + $0x18] sm:$0xff]
        %v1238 = vld [vmem:[%s13] sm:$0x1]
        %v1239 = vld [vmem:[#allocation5] sm:$0xff]
        %v1240 = vld [vmem:[#allocation5 + $0x8] sm:$0xff]
        %v1241 = vld [vmem:[#allocation5 + $0x10] sm:$0xff]
        %v1242 = vld [vmem:[#allocation5 + $0x18] sm:$0xff]
        %v1243 = vld [vmem:[%s15] sm:$0x1]
        %v1244 = vld [vmem:[#allocation7] sm:$0xff]
        %v1245 = vld [vmem:[#allocation7 + $0x8] sm:$0xff]
        %v1246 = vld [vmem:[#allocation7 + $0x10] sm:$0xff]
        %v1247 = vld [vmem:[#allocation7 + $0x18] sm:$0xff]
        %v1249 = vperm.slane %v1238, 0
        %v1252 = vsel %vm970, %v1231, 0
        %1254 = vmatpush.msra.mxu0 0.0
        %1255 = vmatpush.msra.mxu0 0.0
        %1256 = vmatpush.msra.mxu0 0.0
        %1257 = vmatpush.msra.mxu0 0.0
        %1258 = vmatpush.msra.mxu0 0.0
        %1259 = vmatpush.msra.mxu0 0.0
        %1260 = vmatpush.msra.mxu0 0.0
        %1261 = vmatpush.msra.mxu0 0.0
        %1262 = vmatpush.msra.mxu0 0.0
        %1263 = vmatpush.msra.mxu0 0.0
        %1264 = vmatpush.msra.mxu0 0.0
        %1265 = vmatpush.msra.mxu0 0.0
        %1266 = vmatpush.msra.mxu0 %v1237
        %1267 = vmatpush.msra.mxu0 %v1236
        %1268 = vmatpush.msra.mxu0 %v1235
        %1269 = vmatpush.msra.mxu0 %v1234
        %1270 = vmatmul.f32.gmra.mxu0 %v1252
        %v1271 = vpop.f32.mrf.mxu0
        %v1272 = vadd.f32 %v1249, %v1271
        %1273 = vdwg.mxu0
        %v1275 = vperm.slane %v1243, 0
        %v1278 = vsel %vm970, %v1232, 0
        %v1281 = vsel %vm970, %v1233, 0
        %1283 = vmatpush.msra.mxu0 0.0
        %1284 = vmatpush.msra.mxu0 0.0
        %1285 = vmatpush.msra.mxu0 0.0
        %1286 = vmatpush.msra.mxu0 0.0
        %1287 = vmatpush.msra.mxu0 0.0
        %1288 = vmatpush.msra.mxu0 0.0
        %1289 = vmatpush.msra.mxu0 0.0
        %1290 = vmatpush.msra.mxu0 0.0
        %1291 = vmatpush.msra.mxu0 0.0
        %1292 = vmatpush.msra.mxu0 0.0
        %1293 = vmatpush.msra.mxu0 0.0
        %1294 = vmatpush.msra.mxu0 0.0
        %1295 = vmatpush.msra.mxu0 %v1242
        %1296 = vmatpush.msra.mxu0 %v1241
        %1297 = vmatpush.msra.mxu0 %v1240
        %1298 = vmatpush.msra.mxu0 %v1239
        %1299 = vmatmul.f32.gmra.mxu0 %v1278
        %v1300 = vpop.f32.mrf.mxu0
        %v1301 = vadd.f32 %v1275, %v1300
        %1302 = vmatmul.f32.gmra.mxu0 %v1281
        %v1303 = vpop.f32.mrf.mxu0
        %v1304 = vadd.f32 %v1275, %v1303
        %1305 = vdwg.mxu0
        %v1307 = vsel %vm1020, %v1272, 0
        %v1310 = vsel %vm1020, %v1301, 0
        %v1313 = vsel %vm1020, %v1304, 0
        %1315 = vmatpush.xpose.msra.mxu0 0.0
        %1316 = vmatpush.xpose.msra.mxu0 0.0
        %1317 = vmatpush.xpose.msra.mxu0 0.0
        %1318 = vmatpush.xpose.msra.mxu0 0.0
        %1319 = vmatpush.xpose.msra.mxu0 0.0
        %1320 = vmatpush.xpose.msra.mxu0 0.0
        %1321 = vmatpush.xpose.msra.mxu0 0.0
        %1322 = vmatpush.xpose.msra.mxu0 0.0
        %1323 = vmatpush.xpose.msra.mxu0 0.0
        %1324 = vmatpush.xpose.msra.mxu0 0.0
        %1325 = vmatpush.xpose.msra.mxu0 0.0
        %1326 = vmatpush.xpose.msra.mxu0 0.0
        %1327 = vmatpush.xpose.msra.mxu0 0.0
        %1328 = vmatpush.xpose.msra.mxu0 0.0
        %1329 = vmatpush.xpose.msra.mxu0 %v1313
        %1330 = vmatpush.xpose.msra.mxu0 %v1310
        %1331 = vmatmul.f32.gmra.mxu0 %v1307
        %v1332 = vpop.f32.mrf.mxu0
        %v1333 = vadd.f32 0.0, %v1332
        %1334 = vdwg.mxu0
        %v1335 = vmul.f32 %v1333, 0.25
        %vm1336 = vcmask 80896
        %v1337 = vsel %vm1336, %v1335, -inf
        %1338 = vmax.xlane.f32.xlu0 %v1337
        %v1339 = vpop.xlane.xlu0 %1338
        %v1340 = vsub.f32 %v1335, %v1339
        %v1341 = vmul.f32 %v1340, 1.442695
        %v1342 = vpow.pop %v1341
        %v1343 = vsel %vm1336, %v1342, 0.0
        %1344 = vadd.xlane.f32.xlu0 %v1343
        %v1345 = vpop.xlane.xlu0 %1344
        %v1346 = vrcp.pop %v1345
        %v1347 = vmul.f32 %v1342, %v1346
        %1348 = vrot.lane.b32.xlu0 %v1301, 96
        %v1349 = vpop.permute.xlu0 %1348
        %1350 = vrot.lane.b32.xlu0 %v1304, 96
        %v1351 = vpop.permute.xlu0 %1350
        %v1354 = vsel %vm1336, %v1347, 0
        %vm1356 = vcmask 1041408
        %v1357 = vsel %vm1356, %v1351, 0
        %1359 = vmatpush.msra.mxu0 0.0
        %1360 = vmatpush.msra.mxu0 0.0
        %1361 = vmatpush.msra.mxu0 0.0
        %1362 = vmatpush.msra.mxu0 0.0
        %1363 = vmatpush.msra.mxu0 0.0
        %1364 = vmatpush.msra.mxu0 0.0
        %1365 = vmatpush.msra.mxu0 0.0
        %1366 = vmatpush.msra.mxu0 0.0
        %1367 = vmatpush.msra.mxu0 0.0
        %1368 = vmatpush.msra.mxu0 0.0
        %1369 = vmatpush.msra.mxu0 0.0
        %1370 = vmatpush.msra.mxu0 0.0
        %1371 = vmatpush.msra.mxu0 0.0
        %1372 = vmatpush.msra.mxu0 0.0
        %1373 = vmatpush.msra.mxu0 %v1357
        %1374 = vmatpush.msra.mxu0 %v1349
        %1375 = vmatmul.f32.gmra.mxu0 %v1354
        %v1376 = vpop.f32.mrf.mxu0
        %v1377 = vadd.f32 0.0, %v1376
        %1378 = vdwg.mxu0
        %1379 = vrot.lane.b32.xlu0 %v1272, 112
        %v1380 = vpop.permute.xlu0 %1379
        %1381 = vrot.lane.b32.xlu0 %v1301, 112
        %v1382 = vpop.permute.xlu0 %1381
        %1383 = vrot.lane.b32.xlu0 %v1304, 112
        %v1384 = vpop.permute.xlu0 %1383
        %v1385 = vsel %vm1020, %v1380, 0
        %v1387 = vsel %vm1020, %v1382, 0
        %v1389 = vsel %vm1020, %v1384, 0
        %1391 = vmatpush.xpose.msra.mxu0 0.0
        %1392 = vmatpush.xpose.msra.mxu0 0.0
        %1393 = vmatpush.xpose.msra.mxu0 0.0
        %1394 = vmatpush.xpose.msra.mxu0 0.0
        %1395 = vmatpush.xpose.msra.mxu0 0.0
        %1396 = vmatpush.xpose.msra.mxu0 0.0
        %1397 = vmatpush.xpose.msra.mxu0 0.0
        %1398 = vmatpush.xpose.msra.mxu0 0.0
        %1399 = vmatpush.xpose.msra.mxu0 0.0
        %1400 = vmatpush.xpose.msra.mxu0 0.0
        %1401 = vmatpush.xpose.msra.mxu0 0.0
        %1402 = vmatpush.xpose.msra.mxu0 0.0
        %1403 = vmatpush.xpose.msra.mxu0 0.0
        %1404 = vmatpush.xpose.msra.mxu0 0.0
        %1405 = vmatpush.xpose.msra.mxu0 %v1389
        %1406 = vmatpush.xpose.msra.mxu0 %v1387
        %1407 = vmatmul.f32.gmra.mxu0 %v1385
        %v1408 = vpop.f32.mrf.mxu0
        %v1409 = vadd.f32 0.0, %v1408
        %1410 = vdwg.mxu0
        %v1411 = vmul.f32 %v1409, 0.25
        %v1412 = vsel %vm1336, %v1411, -inf
        %1413 = vmax.xlane.f32.xlu0 %v1412
        %v1414 = vpop.xlane.xlu0 %1413
        %v1415 = vsub.f32 %v1411, %v1414
        %v1416 = vmul.f32 %v1415, 1.442695
        %v1417 = vpow.pop %v1416
        %v1418 = vsel %vm1336, %v1417, 0.0
        %1419 = vadd.xlane.f32.xlu0 %v1418
        %v1420 = vpop.xlane.xlu0 %1419
        %v1421 = vrcp.pop %v1420
        %v1422 = vmul.f32 %v1417, %v1421
        %1423 = vrot.lane.b32.xlu0 %v1301, 80
        %v1424 = vpop.permute.xlu0 %1423
        %1425 = vrot.lane.b32.xlu0 %v1304, 80
        %v1426 = vpop.permute.xlu0 %1425
        %v1429 = vsel %vm1336, %v1422, 0
        %v1431 = vsel %vm1356, %v1426, 0
        %1433 = vmatpush.msra.mxu0 0.0
        %1434 = vmatpush.msra.mxu0 0.0
        %1435 = vmatpush.msra.mxu0 0.0
        %1436 = vmatpush.msra.mxu0 0.0
        %1437 = vmatpush.msra.mxu0 0.0
        %1438 = vmatpush.msra.mxu0 0.0
        %1439 = vmatpush.msra.mxu0 0.0
        %1440 = vmatpush.msra.mxu0 0.0
        %1441 = vmatpush.msra.mxu0 0.0
        %1442 = vmatpush.msra.mxu0 0.0
        %1443 = vmatpush.msra.mxu0 0.0
        %1444 = vmatpush.msra.mxu0 0.0
        %1445 = vmatpush.msra.mxu0 0.0
        %1446 = vmatpush.msra.mxu0 0.0
        %1447 = vmatpush.msra.mxu0 %v1431
        %1448 = vmatpush.msra.mxu0 %v1424
        %1449 = vmatmul.f32.gmra.mxu0 %v1429
        %v1450 = vpop.f32.mrf.mxu0
        %v1451 = vadd.f32 0.0, %v1450
        %1452 = vdwg.mxu0
        %1454 = vrot.lane.b32.xlu0 %v1451, 16
        %v1455 = vpop.permute.xlu0 %1454
        %v1457 = vsel %vm1020, %v1377, %v1455
        %v1458 = vld [vmem:[%s17] sm:$0x1]
        %v1460 = vperm.slane %v1458, 0
        %v1463 = vsel %vm970, %v1457, 0
        %1465 = vmatpush.msra.mxu0 0.0
        %1466 = vmatpush.msra.mxu0 0.0
        %1467 = vmatpush.msra.mxu0 0.0
        %1468 = vmatpush.msra.mxu0 0.0
        %1469 = vmatpush.msra.mxu0 0.0
        %1470 = vmatpush.msra.mxu0 0.0
        %1471 = vmatpush.msra.mxu0 0.0
        %1472 = vmatpush.msra.mxu0 0.0
        %1473 = vmatpush.msra.mxu0 0.0
        %1474 = vmatpush.msra.mxu0 0.0
        %1475 = vmatpush.msra.mxu0 0.0
        %1476 = vmatpush.msra.mxu0 0.0
        %1477 = vmatpush.msra.mxu0 %v1247
        %1478 = vmatpush.msra.mxu0 %v1246
        %1479 = vmatpush.msra.mxu0 %v1245
        %1480 = vmatpush.msra.mxu0 %v1244
        %1481 = vmatmul.f32.gmra.mxu0 %v1463
        %v1482 = vpop.f32.mrf.mxu0
        %v1483 = vadd.f32 %v1460, %v1482
        %1484 = vdwg.mxu0
        %v1485 = vadd.f32 %v1483, %v1231
        %v1486 = vld [vmem:[%s18] sm:$0x1]
        %v1487 = vld [vmem:[%s19] sm:$0x1]
        %v1488 = vsel %vm970, %v1485, 0.0
        %1489 = vadd.xlane.f32.xlu0 %v1488
        %v1490 = vpop.xlane.xlu0 %1489
        %v1491 = vmul.f32 %v1490, %v1198
        %v1492 = vsub.f32 %v1485, %v1491
        %v1493 = vmul.f32 %v1492, %v1492
        %v1494 = vsel %vm970, %v1493, 0.0
        %1495 = vadd.xlane.f32.xlu0 %v1494
        %v1496 = vpop.xlane.xlu0 %1495
        %v1497 = vmul.f32 %v1496, %v1198
        %v1498 = vadd.f32 %v1497, 1e-05
        %v1499 = vrsqrt.pop %v1498
        %v1500 = vmul.f32 %v1499, %v1498
        %v1501 = vmul.f32 %v1500, %v1499
        %v1502 = vmul.f32 0.5, %v1501
        %v1503 = vsub.f32 1.5, %v1502
        %v1504 = vmul.f32 %v1499, %v1503
        %vm1505 = vweird.f32 %v1498
        %vm1506 = vweird.f32 %v1499
        %vm1507 = vmor %vm1505, %vm1506
        %v1508 = vsel %vm1507, %v1499, %v1504
        %v1509 = vmul.f32 %v1492, %v1508
        %v1511 = vperm.slane %v1486, 0
        %v1513 = vmul.f32 %v1509, %v1511
        %v1515 = vperm.slane %v1487, 0
        %v1517 = vadd.f32 %v1513, %v1515
        %v1518 = vmul.f32 %v1517, %v1229
        %v1519 = vld [vmem:[#allocation8] sm:$0xff]
        %v1520 = vld [vmem:[#allocation8 + $0x8] sm:$0xff]
        %v1521 = vld [vmem:[#allocation8 + $0x10] sm:$0xff]
        %v1522 = vld [vmem:[#allocation8 + $0x18] sm:$0xff]
        %v1523 = vld [vmem:[%s21] sm:$0x1]
        %v1525 = vperm.slane %v1523, 0
        %v1528 = vsel %vm970, %v1518, 0
        %1530 = vmatpush.msra.mxu0 0.0
        %1531 = vmatpush.msra.mxu0 0.0
        %1532 = vmatpush.msra.mxu0 0.0
        %1533 = vmatpush.msra.mxu0 0.0
        %1534 = vmatpush.msra.mxu0 0.0
        %1535 = vmatpush.msra.mxu0 0.0
        %1536 = vmatpush.msra.mxu0 0.0
        %1537 = vmatpush.msra.mxu0 0.0
        %1538 = vmatpush.msra.mxu0 0.0
        %1539 = vmatpush.msra.mxu0 0.0
        %1540 = vmatpush.msra.mxu0 0.0
        %1541 = vmatpush.msra.mxu0 0.0
        %1542 = vmatpush.msra.mxu0 %v1522
        %1543 = vmatpush.msra.mxu0 %v1521
        %1544 = vmatpush.msra.mxu0 %v1520
        %1545 = vmatpush.msra.mxu0 %v1519
        %1546 = vmatmul.f32.gmra.mxu0 %v1528
        %v1547 = vpop.f32.mrf.mxu0
        %v1548 = vadd.f32 %v1525, %v1547
        %1549 = vdwg.mxu0
        %v1550 = vmax.f32 %v1548, 0.0
        %v1551 = vld [vmem:[%s22] sm:$0xff]
        %v1552 = vld [vmem:[%s22 + $0x8] sm:$0xff]
        %v1553 = vld [vmem:[%s22 + $0x10] sm:$0xff]
        %v1554 = vld [vmem:[%s22 + $0x18] sm:$0xff]
        %v1555 = vld [vmem:[%s22 + $0x20] sm:$0xff]
        %v1556 = vld [vmem:[%s22 + $0x28] sm:$0xff]
        %v1557 = vld [vmem:[%s22 + $0x30] sm:$0xff]
        %v1558 = vld [vmem:[%s22 + $0x38] sm:$0xff]
        %v1559 = vld [vmem:[%s23] sm:$0x1]
        %v1561 = vperm.slane %v1559, 0
        %vm1563 = vcmask 523264
        %v1565 = vsel %vm1563, %v1550, 0
        %1567 = vmatpush.msra.mxu0 0.0
        %1568 = vmatpush.msra.mxu0 0.0
        %1569 = vmatpush.msra.mxu0 0.0
        %1570 = vmatpush.msra.mxu0 0.0
        %1571 = vmatpush.msra.mxu0 0.0
        %1572 = vmatpush.msra.mxu0 0.0
        %1573 = vmatpush.msra.mxu0 0.0
        %1574 = vmatpush.msra.mxu0 0.0
        %1575 = vmatpush.msra.mxu0 %v1558
        %1576 = vmatpush.msra.mxu0 %v1557
        %1577 = vmatpush.msra.mxu0 %v1556
        %1578 = vmatpush.msra.mxu0 %v1555
        %1579 = vmatpush.msra.mxu0 %v1554
        %1580 = vmatpush.msra.mxu0 %v1553
        %1581 = vmatpush.msra.mxu0 %v1552
        %1582 = vmatpush.msra.mxu0 %v1551
        %1583 = vmatmul.f32.gmra.mxu0 %v1565
        %v1584 = vpop.f32.mrf.mxu0
        %v1585 = vadd.f32 %v1561, %v1584
        %1586 = vdwg.mxu0
        %v1587 = vadd.f32 %v1585, %v1518
        %v1588 = vld [vmem:[%s24] sm:$0x1]
        %v1589 = vld [vmem:[%s25] sm:$0x1]
        %v1590 = vsel %vm970, %v1587, 0.0
        %1591 = vadd.xlane.f32.xlu0 %v1590
        %v1592 = vpop.xlane.xlu0 %1591
        %v1593 = vmul.f32 %v1592, %v1198
        %v1594 = vsub.f32 %v1587, %v1593
        %v1595 = vmul.f32 %v1594, %v1594
        %v1596 = vsel %vm970, %v1595, 0.0
        %1597 = vadd.xlane.f32.xlu0 %v1596
        %v1598 = vpop.xlane.xlu0 %1597
        %v1599 = vmul.f32 %v1598, %v1198
        %v1600 = vadd.f32 %v1599, 1e-05
        %v1601 = vrsqrt.pop %v1600
        %v1602 = vmul.f32 %v1601, %v1600
        %v1603 = vmul.f32 %v1602, %v1601
        %v1604 = vmul.f32 0.5, %v1603
        %v1605 = vsub.f32 1.5, %v1604
        %v1606 = vmul.f32 %v1601, %v1605
        %vm1607 = vweird.f32 %v1600
        %vm1608 = vweird.f32 %v1601
        %vm1609 = vmor %vm1607, %vm1608
        %v1610 = vsel %vm1609, %v1601, %v1606
        %v1611 = vmul.f32 %v1594, %v1610
        %v1613 = vperm.slane %v1588, 0
        %v1615 = vmul.f32 %v1611, %v1613
        %v1617 = vperm.slane %v1589, 0
        %v1619 = vadd.f32 %v1615, %v1617
        %v1620 = vmul.f32 %v1619, %v1229
        %1621 = vst.msk [vmem:[%s919] sm:$0xff] %vm970, %v1620
        %s1622 = sand.u32 %s635, 1
        %s1623 = scalar_lea.sflag [#allocation4], %s1622
        %s1624 = sand.u32 %s635, 1
        %s1625 = smul.addr %s1624, 8
        %s1626 = scalar_lea.vmem [#allocation10], %s1625
        // Predicated region
        $region141: #{tpu_custom_call.1} parent=123 // pred_check
          %p1627 = pneg %p645
        $region142: #{tpu_custom_call.1} parent=123 // pred_check_branch
          %1629 = sbr.rel (%p1627) target = $region144
        $region143: #{tpu_custom_call.1} parent=123 // pred_region
          %1631 = vsyncadd %s1623, 0
          %s1632 = sadd.s32 %s50, %s49
          %s1633 = smul.addr %s1632, 8
          %s1634 = scalar_lea.hbm %s26, %s1633
          %s1636 = sshll.u32 %s1626, 4
          %s1637 = int_to_ptr.vmem [resolvable:$true] %s1636
          %s1638 = sshll.u32 %s1634, 4
          %s1639 = int_to_ptr.hbm [resolvable:$true] %s1638
          %1641 = dma.vmem_to_hbm [thread:$0]  %s1637, 128, %s1639, %s1623
        $region144: #{tpu_custom_call.1} parent=123 // pred_fallthru
          _
      $region124: #{tpu_custom_call.1} parent=5 // pred_fallthru
        _
      %p1642 = scmp.le.s32.totalorder 2, %s40
      // Predicated region
      $region145: #{tpu_custom_call.1} parent=5 // pred_check
        %p1643 = pneg %p1642
      $region146: #{tpu_custom_call.1} parent=5 // pred_check_branch
        %1645 = sbr.rel (%p1643) target = $region148
      $region147: #{tpu_custom_call.1} parent=5 // pred_region
        %s1646 = ssub.s32 %s40, 2
        // Predicated region
        $region149: #{tpu_custom_call.1} parent=147 // pred_check
          %p1647 = pneg %p651
        $region150: #{tpu_custom_call.1} parent=147 // pred_check_branch
          %1649 = sbr.rel (%p1647) target = $region152
        $region151: #{tpu_custom_call.1} parent=147 // pred_region
          %s1650 = sand.u32 %s636, 1
          %s1651 = scalar_lea.sflag [#allocation4], %s1650
          %s1652 = sand.u32 %s636, 1
          %s1653 = smul.addr %s1652, 8
          %s1654 = scalar_lea.vmem [#allocation10], %s1653
          %1656 = dma.done %s1651, 128
        $region152: #{tpu_custom_call.1} parent=147 // pred_fallthru
          _
      $region148: #{tpu_custom_call.1} parent=5 // pred_fallthru
        _
    $region6: #{tpu_custom_call.1} parent=1 // loop_footer
      %s44 = sadd.s32 1, %s40
    $region7: #{tpu_custom_call.1} parent=1 // loop_footer_branch
      %39 = sbr.rel target = $region3
    $region8: #{tpu_custom_call.1} parent=1 // loop_exit
      _
    %1657 = vsyncpa [#allocation3], 1
    %s1658 = scalar_lea.sflag [#allocation3], 1
    %1659 = vsyncpa %s1658, 1
    %1660 = vsyncpa [#allocation6], 1
    %1661 = vsyncpa [#allocation9], 1
    %1662 = vsyncpa [#allocation4], 1
    %s1663 = scalar_lea.sflag [#allocation4], 1
    %1664 = vsyncpa %s1663, 1

</llo_original>
